<compile_context>
chip_gen: v7x
topology: tpu7x:2x2x1
jax: 0.10.0
libtpu: 0.0.40
codegen_flags: <defaults>
</compile_context>

<pallas_src>
import functools
import math

import jax
import jax.numpy as jnp
from jax.experimental import pallas as pl
from jax.experimental.pallas import tpu as pltpu


# ---------------------------------------------------------------------------
# Kernels
# ---------------------------------------------------------------------------

def _heads_softmax_kernel(q_ref, kp_ref, vp_ref,
                          wq_t_ref, bq_ref, wo_t_ref, bo_ref,
                          o_ref,
                          qp_sc, acc_sc, *,
                          num_heads, head_dim, scale, approx_recip):
    """Softmax over the HEADS axis (PyTorch implicit-dim softmax on 4-D scores)."""
    H, dh = num_heads, head_dim
    tq = q_ref.shape[1]
    tk = kp_ref.shape[1]
    D = H * dh
    kt = pl.program_id(2)
    cd = kp_ref.dtype            # MXU operand dtype (weights pre-cast in wrapper)

    # Once per (batch, q-tile): project q (1/sqrt(dh) folded in) and clear acc.
    @pl.when(kt == 0)
    def _init():
        qp = jnp.dot(q_ref[0], wq_t_ref[...],
                     preferred_element_type=jnp.float32) + bq_ref[...]
        qp_sc[...] = (qp * scale).astype(cd)
        acc_sc[...] = jnp.zeros_like(acc_sc)

    qh = qp_sc[...].reshape(tq, H, dh)
    kh = kp_ref[0].reshape(tk, H, dh)
    vh = vp_ref[0].reshape(tk, H, dh)
    # TODO(synk): for head_dim < 128 a lane-packed multi-head MXU layout would
    # fill the systolic array better than this (..., H, head_dim) reshape.

    # Per-head scores (H, tq, tk), f32 accumulation on the MXU.
    s = jnp.einsum('qhd,khd->hqk', qh, kh, preferred_element_type=jnp.float32)

    # Softmax over heads (axis 0): normalisation is per (q, k) element, so each
    # key tile is independent -> plain accumulation, no running max/sum needed.
    m = jnp.max(s, axis=0, keepdims=True)
    e = jnp.exp(s - m)
    denom = jnp.sum(e, axis=0, keepdims=True)
    p = e * pl.reciprocal(denom, approx=approx_recip)
    # Dropout: identity at inference.

    ctx = jnp.einsum('hqk,khd->qhd', p.astype(cd), vh,
                     preferred_element_type=jnp.float32)
    acc_sc[...] += ctx.reshape(tq, D)

    # Once per (batch, q-tile): output projection and a single lane-dense store.
    @pl.when(kt == pl.num_programs(2) - 1)
    def _finalize():
        out = jnp.dot(acc_sc[...].astype(cd), wo_t_ref[...],
                      preferred_element_type=jnp.float32) + bo_ref[...]
        o_ref[0] = out.astype(o_ref.dtype)


def _key_softmax_kernel(q_ref, kp_ref, vp_ref,
                        wq_t_ref, bq_ref, wo_t_ref, bo_ref,
                        o_ref,
                        qp_sc, m_sc, l_sc, acc_sc, *,
                        num_heads, head_dim, scale, approx_recip):
    """Conventional softmax over the key axis, flash-style across key tiles."""
    H, dh = num_heads, head_dim
    tq = q_ref.shape[1]
    tk = kp_ref.shape[1]
    D = H * dh
    kt = pl.program_id(2)
    cd = kp_ref.dtype

    @pl.when(kt == 0)
    def _init():
        qp = jnp.dot(q_ref[0], wq_t_ref[...],
                     preferred_element_type=jnp.float32) + bq_ref[...]
        qp_sc[...] = (qp * scale).astype(cd)
        m_sc[...] = jnp.full_like(m_sc, -jnp.inf)
        l_sc[...] = jnp.zeros_like(l_sc)
        acc_sc[...] = jnp.zeros_like(acc_sc)

    qh = qp_sc[...].reshape(tq, H, dh)
    kh = kp_ref[0].reshape(tk, H, dh)
    vh = vp_ref[0].reshape(tk, H, dh)

    s = jnp.einsum('qhd,khd->hqk', qh, kh, preferred_element_type=jnp.float32)

    m_new = jnp.maximum(m_sc[...], jnp.max(s, axis=-1, keepdims=True))
    alpha = jnp.exp(m_sc[...] - m_new)
    p = jnp.exp(s - m_new)
    l_sc[...] = alpha * l_sc[...] + jnp.sum(p, axis=-1, keepdims=True)
    acc_sc[...] = alpha * acc_sc[...] + jnp.einsum(
        'hqk,khd->hqd', p.astype(cd), vh, preferred_element_type=jnp.float32)
    m_sc[...] = m_new

    @pl.when(kt == pl.num_programs(2) - 1)
    def _finalize():
        ctx = acc_sc[...] * pl.reciprocal(l_sc[...], approx=approx_recip)
        ctx = jnp.transpose(ctx, (1, 0, 2)).reshape(tq, D)
        out = jnp.dot(ctx.astype(cd), wo_t_ref[...],
                      preferred_element_type=jnp.float32) + bo_ref[...]
        o_ref[0] = out.astype(o_ref.dtype)


# ---------------------------------------------------------------------------
# Wrapper
# ---------------------------------------------------------------------------

def _tile_candidates(S):
    """Multiples of 8 that divide S (fallback: the full extent S)."""
    cands = [t for t in range(8, S + 1, 8) if S % t == 0]
    return cands if cands else [S]


def _vmem_budget_bytes():
    """(tile working-set budget, vmem_limit_bytes) per TPU generation."""
    kind = ""
    try:
        kind = jax.devices()[0].device_kind.lower()
    except Exception:
        pass
    if "v7" in kind:
        # 64 MiB physical VMEM per TensorCore: stay tight.
        return 36 * 1024 * 1024, 48 * 1024 * 1024
    if "v5" in kind or "v6" in kind:
        # 128 MiB physical VMEM: bigger tiles -> fewer grid steps, better MXU fill.
        return 80 * 1024 * 1024, 100 * 1024 * 1024
    # Unknown generation: conservative.
    return 36 * 1024 * 1024, 48 * 1024 * 1024


def self_attention_slice(q, k, v, params, num_heads, *,
                         q_tile=None, k_tile=None,
                         softmax_over_heads=True,
                         compute_dtype=jnp.bfloat16):
    """SelfAttentionSlice.forward as a Pallas TPU kernel.

    params holds PyTorch-convention Linear weights (out_features, in_features):
      'wq' (D,D), 'bq' (D,), 'wk' (D,D), 'wo' (D,D) [the module's `linear`],
      'bo' (D,).  'wv' may be present but is unused (as in the reference).
    """
    B, S, D = q.shape
    assert k.shape == (B, S, D) and v.shape == (B, S, D)
    assert D % num_heads == 0
    H = num_heads
    head_dim = D // H
    out_dtype = q.dtype
    cd = jnp.dtype(compute_dtype)
    f32 = jnp.float32
    approx_recip = cd != jnp.dtype(jnp.float32)   # exact recip on the f32 path

    # PyTorch Linear stores (out_features, in_features); transpose once here so
    # the kernel does plain x @ W_t with no per-step transposes.
    wq_t = jnp.asarray(params['wq'], f32).T
    wk_t = jnp.asarray(params['wk'], f32).T
    wo_t = jnp.asarray(params['wo'], f32).T
    bq = jnp.asarray(params['bq'], f32).reshape(1, D)
    bo = jnp.asarray(params['bo'], f32).reshape(1, D)

    # MXU operands pre-cast to compute dtype (f32 accumulation stays in-kernel).
    wq_t_cd = wq_t.astype(cd)
    wo_t_cd = wo_t.astype(cd)
    q_cd = q.astype(cd)

    # Hoisted K/V projection: the reference projects BOTH k and v with wk (wv
    # is unused), and the result is q-tile independent, so compute it once in
    # XLA instead of once per q tile inside the kernel.
    wk_t_cd = wk_t.astype(cd)
    kp = jnp.einsum('bsd,de->bse', k.astype(cd), wk_t_cd,
                    preferred_element_type=f32).astype(cd)
    vp = jnp.einsum('bsd,de->bse', v.astype(cd), wk_t_cd,
                    preferred_element_type=f32).astype(cd)

    # ---- tile selection against a generation-aware VMEM budget --------------
    budget, vmem_limit = _vmem_budget_bytes()
    cd_b = cd.itemsize
    out_b = jnp.dtype(out_dtype).itemsize

    def working_set(tq, tk):
        weights = 2 * D * D * cd_b + 2 * D * 4           # single-buffered consts
        q_blk = 2 * tq * D * cd_b                        # double-buffered
        kv_blk = 2 * 2 * tk * D * cd_b                   # kp + vp, double-buffered
        o_blk = 2 * tq * D * out_b
        scratch = tq * D * cd_b + tq * D * 4 + 2 * H * tq * 4
        scores = 3 * H * tq * tk * 4                     # s / exp / probs temps
        return weights + q_blk + kv_blk + o_blk + scratch + scores

    q_cands = _tile_candidates(S) if q_tile is None else [int(q_tile)]
    k_cands = _tile_candidates(S) if k_tile is None else [int(k_tile)]
    qi, ki = len(q_cands) - 1, len(k_cands) - 1
    # Prefer large q tiles (fewer grid steps, better MXU fill); shrink tk first.
    while working_set(q_cands[qi], k_cands[ki]) > budget and (qi > 0 or ki > 0):
        if ki > 0:
            ki -= 1
        else:
            qi -= 1
    tq, tk = q_cands[qi], k_cands[ki]
    assert S % tq == 0 and S % tk == 0
    num_q_tiles, num_k_tiles = S // tq, S // tk

    scale = 1.0 / math.sqrt(head_dim)
    if softmax_over_heads:
        kernel = functools.partial(
            _heads_softmax_kernel, num_heads=H, head_dim=head_dim,
            scale=scale, approx_recip=approx_recip)
        scratch_shapes = [pltpu.VMEM((tq, D), cd),            # projected q
                          pltpu.VMEM((tq, D), f32)]           # context accumulator
    else:
        kernel = functools.partial(
            _key_softmax_kernel, num_heads=H, head_dim=head_dim,
            scale=scale, approx_recip=approx_recip)
        scratch_shapes = [pltpu.VMEM((tq, D), cd),            # projected q
                          pltpu.VMEM((H, tq, 1), f32),        # running max
                          pltpu.VMEM((H, tq, 1), f32),        # running sum
                          pltpu.VMEM((H, tq, head_dim), f32)] # context accumulator

    # Cost estimate: in-kernel q/output projections + attention matmuls
    # (K/V projection is now outside), k/v blocks re-read once per q tile.
    flops = 4 * B * S * D * D + 4 * B * S * S * D
    bytes_accessed = (B * S * D * cd_b * (1 + 2 * num_q_tiles)
                      + 2 * D * D * cd_b + 2 * D * 4
                      + B * S * D * out_b)
    cost = pl.CostEstimate(flops=flops, transcendentals=B * H * S * S,
                           bytes_accessed=bytes_accessed)

    const = lambda b, i, j: (0, 0)
    return pl.pallas_call(
        kernel,
        out_shape=jax.ShapeDtypeStruct((B, S, D), out_dtype),
        grid=(B, num_q_tiles, num_k_tiles),
        in_specs=[
            pl.BlockSpec((1, tq, D), lambda b, i, j: (b, i, 0)),          # q
            pl.BlockSpec((1, tk, D), lambda b, i, j: (b, j, 0)),          # k @ wk^T
            pl.BlockSpec((1, tk, D), lambda b, i, j: (b, j, 0)),          # v @ wk^T
            pl.BlockSpec((D, D), const, pipeline_mode=pl.Buffered(1)),    # wq^T
            pl.BlockSpec((1, D), const, pipeline_mode=pl.Buffered(1)),    # bq
            pl.BlockSpec((D, D), const, pipeline_mode=pl.Buffered(1)),    # wo^T
            pl.BlockSpec((1, D), const, pipeline_mode=pl.Buffered(1)),    # bo
        ],
        out_specs=pl.BlockSpec((1, tq, D), lambda b, i, j: (b, i, 0)),
        scratch_shapes=scratch_shapes,
        compiler_params=pltpu.CompilerParams(
            dimension_semantics=("parallel", "parallel", "arbitrary"),
            vmem_limit_bytes=vmem_limit),
        cost_estimate=cost,
    )(q_cd, kp, vp, wq_t_cd, bq, wo_t_cd, bo)


# ---------------------------------------------------------------------------
# Pure-JAX reference mirroring the PyTorch forward (eval mode)
# ---------------------------------------------------------------------------

def _reference(q, k, v, params, num_heads, softmax_axis):
    B, S, D = q.shape
    dh = D // num_heads
    qp = q @ params['wq'].T + params['bq']
    kp = k @ params['wk'].T
    vp = v @ params['wk'].T            # reference quirk kept: wk projects v too
    def split(x):
        return x.reshape(B, S, num_heads, dh).transpose(0, 2, 1, 3)
    qh, kh, vh = split(qp), split(kp), split(vp)
    s = jnp.einsum('bhqd,bhkd->bhqk', qh, kh) / math.sqrt(dh)
    p = jax.nn.softmax(s, axis=softmax_axis)
    ctx = jnp.einsum('bhqk,bhkd->bhqd', p, vh)
    ctx = ctx.transpose(0, 2, 1, 3).reshape(B, S, D)
    return ctx @ params['wo'].T + params['bo']


if __name__ == "__main__":
    H = 4

    def make(B, S, D, key):
        ks = jax.random.split(key, 9)
        scale = 1.0 / math.sqrt(D)
        params = {
            'wq': jax.random.uniform(ks[0], (D, D), jnp.float32, -scale, scale),
            'bq': jax.random.uniform(ks[1], (D,),   jnp.float32, -scale, scale),
            'wk': jax.random.uniform(ks[2], (D, D), jnp.float32, -scale, scale),
            # wv exists in the module's __init__ but forward never uses it.
            'wv': jax.random.uniform(ks[3], (D, D), jnp.float32, -scale, scale),
            'wo': jax.random.uniform(ks[4], (D, D), jnp.float32, -scale, scale),
            'bo': jax.random.uniform(ks[5], (D,),   jnp.float32, -scale, scale),
        }
        q = jax.random.normal(ks[6], (B, S, D), jnp.float32)
        k = jax.random.normal(ks[7], (B, S, D), jnp.float32)
        v = jax.random.normal(ks[8], (B, S, D), jnp.float32)
        return params, q, k, v

    # --- module-scale config: batch=2, seq=8, dim_model=32, heads=4 ---------
    params, q, k, v = make(2, 8, 32, jax.random.PRNGKey(0))

    # Default path: bf16 MXU operands, PyTorch-faithful heads-axis softmax.
    out = jax.block_until_ready(self_attention_slice(q, k, v, params, H))
    ref = _reference(q, k, v, params, H, softmax_axis=1)
    assert out.shape == ref.shape
    assert jnp.allclose(out, ref, atol=5e-2, rtol=5e-2), \
        float(jnp.max(jnp.abs(out - ref)))

    # Exact f32 path (heads softmax).
    out_f32 = jax.block_until_ready(
        self_attention_slice(q, k, v, params, H, compute_dtype=jnp.float32))
    assert jnp.allclose(out_f32, ref, atol=1e-4, rtol=1e-4), \
        float(jnp.max(jnp.abs(out_f32 - ref)))

    # Exact f32 path, conventional key-axis softmax.
    out_keys = jax.block_until_ready(
        self_attention_slice(q, k, v, params, H, compute_dtype=jnp.float32,
                             softmax_over_heads=False))
    ref_keys = _reference(q, k, v, params, H, softmax_axis=-1)
    assert jnp.allclose(out_keys, ref_keys, atol=1e-4, rtol=1e-4), \
        float(jnp.max(jnp.abs(out_keys - ref_keys)))

    # Exercise the multi-tile (q- and key-axis) grid path at S=16.
    params2, q2, k2, v2 = make(2, 16, 32, jax.random.PRNGKey(1))
    out_t = jax.block_until_ready(
        self_attention_slice(q2, k2, v2, params2, H, compute_dtype=jnp.float32,
                             q_tile=8, k_tile=8))
    ref_t = _reference(q2, k2, v2, params2, H, softmax_axis=1)
    assert jnp.allclose(out_t, ref_t, atol=1e-4, rtol=1e-4), \
        float(jnp.max(jnp.abs(out_t - ref_t)))

    out_tf = jax.block_until_ready(
        self_attention_slice(q2, k2, v2, params2, H, compute_dtype=jnp.float32,
                             q_tile=8, k_tile=8, softmax_over_heads=False))
    ref_tf = _reference(q2, k2, v2, params2, H, softmax_axis=-1)
    assert jnp.allclose(out_tf, ref_tf, atol=1e-4, rtol=1e-4), \
        float(jnp.max(jnp.abs(out_tf - ref_tf)))

    print("KERNEL_OK")
</pallas_src>

<mosaic_0001>
module attributes {stable_mosaic.version = 11 : i64} {
  func.func @_heads_softmax_kernel(%arg0: i32, %arg1: i32, %arg2: i32, %arg3: memref<1x8x32xbf16, #tpu.memory_space<vmem>>, %arg4: memref<1x8x32xbf16, #tpu.memory_space<vmem>>, %arg5: memref<1x8x32xbf16, #tpu.memory_space<vmem>>, %arg6: memref<32x32xbf16, #tpu.memory_space<vmem>>, %arg7: memref<1x32xf32, #tpu.memory_space<vmem>>, %arg8: memref<32x32xbf16, #tpu.memory_space<vmem>>, %arg9: memref<1x32xf32, #tpu.memory_space<vmem>>, %arg10: memref<1x8x32xf32, #tpu.memory_space<vmem>>, %arg11: memref<8x32xbf16, #tpu.memory_space<vmem>>, %arg12: memref<8x32xf32, #tpu.memory_space<vmem>>) attributes {dimension_semantics = [#tpu.dimension_semantics<parallel>, #tpu.dimension_semantics<parallel>, #tpu.dimension_semantics<arbitrary>], iteration_bounds = array<i64: 2, 1, 1>, scalar_prefetch = 0 : i64, scratch_operands = 2 : i64, tpu.core_type = #tpu.core_type<tc>, window_params = [{transform_indices = @transform_0, window_bounds = array<i64: 1, 8, 32>}, {transform_indices = @transform_1, window_bounds = array<i64: 1, 8, 32>}, {transform_indices = @transform_2, window_bounds = array<i64: 1, 8, 32>}, {pipeline_mode = #tpu.pipeline_mode<synchronous>, transform_indices = @transform_3, window_bounds = array<i64: 32, 32>}, {pipeline_mode = #tpu.pipeline_mode<synchronous>, transform_indices = @transform_4, window_bounds = array<i64: 1, 32>}, {pipeline_mode = #tpu.pipeline_mode<synchronous>, transform_indices = @transform_5, window_bounds = array<i64: 32, 32>}, {pipeline_mode = #tpu.pipeline_mode<synchronous>, transform_indices = @transform_6, window_bounds = array<i64: 1, 32>}, {transform_indices = @transform_7, window_bounds = array<i64: 1, 8, 32>}]} {
    %c0_i32 = arith.constant 0 : i32
    %0 = arith.cmpi eq, %arg2, %c0_i32 : i32
    %1 = arith.extui %0 : i1 to i32
    %c0_i32_0 = arith.constant 0 : i32
    %2 = arith.cmpi ne, %1, %c0_i32_0 : i32
    scf.if %2 {
      %c0_17 = arith.constant 0 : index
      %c0_18 = arith.constant 0 : index
      %c0_19 = arith.constant 0 : index
      %32 = vector.load %arg3[%c0_17, %c0_18, %c0_19] : memref<1x8x32xbf16, #tpu.memory_space<vmem>>, vector<1x8x32xbf16>
      %33 = vector.shape_cast %32 : vector<1x8x32xbf16> to vector<8x32xbf16>
      %c0_20 = arith.constant 0 : index
      %c0_21 = arith.constant 0 : index
      %34 = vector.load %arg6[%c0_20, %c0_21] : memref<32x32xbf16, #tpu.memory_space<vmem>>, vector<32x32xbf16>
      %cst_22 = arith.constant dense<0.000000e+00> : vector<8x32xf32>
      %35 = tpu.matmul %33, %34, %cst_22 {dimension_numbers = #tpu.dot_dimension_numbers<[1], [0], [0], [1], [0, 0, 1, 1], [], []>} : vector<8x32xbf16>, vector<32x32xbf16>, vector<8x32xf32> -> vector<8x32xf32>
      %c0_23 = arith.constant 0 : index
      %c0_24 = arith.constant 0 : index
      %36 = vector.load %arg7[%c0_23, %c0_24] : memref<1x32xf32, #tpu.memory_space<vmem>>, vector<1x32xf32>
      %37 = vector.broadcast %36 : vector<1x32xf32> to vector<8x32xf32>
      %38 = arith.addf %35, %37 : vector<8x32xf32>
      %cst_25 = arith.constant 0.353553385 : f32
      %39 = vector.broadcast %cst_25 : f32 to vector<8x32xf32>
      %40 = arith.mulf %38, %39 : vector<8x32xf32>
      %41 = arith.truncf %40 : vector<8x32xf32> to vector<8x32xbf16>
      %c0_26 = arith.constant 0 : index
      %c0_27 = arith.constant 0 : index
      %42 = vector.load %arg11[%c0_26, %c0_27] : memref<8x32xbf16, #tpu.memory_space<vmem>>, vector<8x32xbf16>
      tpu.vector_store %arg11[%c0_26, %c0_27], %41 {strides = array<i32>} : memref<8x32xbf16, #tpu.memory_space<vmem>>, vector<8x32xbf16>,
      %cst_28 = arith.constant 0.000000e+00 : f32
      %43 = vector.broadcast %cst_28 : f32 to vector<8x32xf32>
      %c0_29 = arith.constant 0 : index
      %c0_30 = arith.constant 0 : index
      %44 = vector.load %arg12[%c0_29, %c0_30] : memref<8x32xf32, #tpu.memory_space<vmem>>, vector<8x32xf32>
      tpu.vector_store %arg12[%c0_29, %c0_30], %43 {strides = array<i32>} : memref<8x32xf32, #tpu.memory_space<vmem>>, vector<8x32xf32>,
    } else {
    }
    %c0 = arith.constant 0 : index
    %c0_1 = arith.constant 0 : index
    %3 = vector.load %arg11[%c0, %c0_1] : memref<8x32xbf16, #tpu.memory_space<vmem>>, vector<8x32xbf16>
    %4 = vector.shape_cast %3 : vector<8x32xbf16> to vector<8x4x8xbf16>
    %c0_2 = arith.constant 0 : index
    %c0_3 = arith.constant 0 : index
    %c0_4 = arith.constant 0 : index
    %5 = vector.load %arg4[%c0_2, %c0_3, %c0_4] : memref<1x8x32xbf16, #tpu.memory_space<vmem>>, vector<1x8x32xbf16>
    %6 = vector.shape_cast %5 : vector<1x8x32xbf16> to vector<8x32xbf16>
    %7 = vector.shape_cast %6 : vector<8x32xbf16> to vector<8x4x8xbf16>
    %c0_5 = arith.constant 0 : index
    %c0_6 = arith.constant 0 : index
    %c0_7 = arith.constant 0 : index
    %8 = vector.load %arg5[%c0_5, %c0_6, %c0_7] : memref<1x8x32xbf16, #tpu.memory_space<vmem>>, vector<1x8x32xbf16>
    %9 = vector.shape_cast %8 : vector<1x8x32xbf16> to vector<8x32xbf16>
    %10 = vector.shape_cast %9 : vector<8x32xbf16> to vector<8x4x8xbf16>
    "tpu.trace_start"() <{level = 10 : i32, message = "qhd,khd->hqk"}> : () -> ()
    %cst = arith.constant dense<0.000000e+00> : vector<4x8x8xf32>
    %11 = tpu.matmul %4, %7, %cst {dimension_numbers = #tpu.dot_dimension_numbers<[2], [2], [0], [0], [0, 1, 0, 0, 1, 0], [1], [1]>} : vector<8x4x8xbf16>, vector<8x4x8xbf16>, vector<4x8x8xf32> -> vector<4x8x8xf32>
    "tpu.trace_stop"() : () -> ()
    %cst_8 = arith.constant dense<0xFF800000> : vector<8x8xf32>
    %12 = vector.multi_reduction <maximumf>, %11, %cst_8 [0] : vector<4x8x8xf32> to vector<8x8xf32>
    %13 = vector.shape_cast %12 : vector<8x8xf32> to vector<1x8x8xf32>
    %14 = vector.broadcast %13 : vector<1x8x8xf32> to vector<4x8x8xf32>
    %15 = arith.subf %11, %14 : vector<4x8x8xf32>
    %16 = math.exp %15 : vector<4x8x8xf32>
    %cst_9 = arith.constant dense<0.000000e+00> : vector<8x8xf32>
    %17 = vector.multi_reduction <add>, %16, %cst_9 [0] : vector<4x8x8xf32> to vector<8x8xf32>
    %18 = vector.shape_cast %17 : vector<8x8xf32> to vector<1x8x8xf32>
    %19 = tpu.reciprocal %18 {approx = true} : vector<1x8x8xf32> -> vector<1x8x8xf32>
    %20 = vector.broadcast %19 : vector<1x8x8xf32> to vector<4x8x8xf32>
    %21 = arith.mulf %16, %20 : vector<4x8x8xf32>
    %22 = arith.truncf %21 : vector<4x8x8xf32> to vector<4x8x8xbf16>
    "tpu.trace_start"() <{level = 10 : i32, message = "hqk,khd->qhd"}> : () -> ()
    %cst_10 = arith.constant dense<0.000000e+00> : vector<4x8x8xf32>
    %23 = tpu.matmul %10, %22, %cst_10 {dimension_numbers = #tpu.dot_dimension_numbers<[0], [2], [2], [1], [0, 1, 0, 2, 1, 1], [1], [0]>} : vector<8x4x8xbf16>, vector<4x8x8xbf16>, vector<4x8x8xf32> -> vector<4x8x8xf32>
    %24 = tpu.transpose %23, [2, 0, 1] : vector<4x8x8xf32> -> vector<8x4x8xf32>
    "tpu.trace_stop"() : () -> ()
    %c0_11 = arith.constant 0 : index
    %c0_12 = arith.constant 0 : index
    %25 = vector.load %arg12[%c0_11, %c0_12] : memref<8x32xf32, #tpu.memory_space<vmem>>, vector<8x32xf32>
    %26 = vector.shape_cast %24 : vector<8x4x8xf32> to vector<8x32xf32>
    %27 = arith.addf %25, %26 : vector<8x32xf32>
    %c0_13 = arith.constant 0 : index
    %c0_14 = arith.constant 0 : index
    %28 = vector.load %arg12[%c0_13, %c0_14] : memref<8x32xf32, #tpu.memory_space<vmem>>, vector<8x32xf32>
    tpu.vector_store %arg12[%c0_13, %c0_14], %27 {strides = array<i32>} : memref<8x32xf32, #tpu.memory_space<vmem>>, vector<8x32xf32>,
    %c0_i32_15 = arith.constant 0 : i32
    %29 = arith.cmpi eq, %arg2, %c0_i32_15 : i32
    %30 = arith.extui %29 : i1 to i32
    %c0_i32_16 = arith.constant 0 : i32
    %31 = arith.cmpi ne, %30, %c0_i32_16 : i32
    scf.if %31 {
      %c0_17 = arith.constant 0 : index
      %c0_18 = arith.constant 0 : index
      %32 = vector.load %arg12[%c0_17, %c0_18] : memref<8x32xf32, #tpu.memory_space<vmem>>, vector<8x32xf32>
      %33 = arith.truncf %32 : vector<8x32xf32> to vector<8x32xbf16>
      %c0_19 = arith.constant 0 : index
      %c0_20 = arith.constant 0 : index
      %34 = vector.load %arg8[%c0_19, %c0_20] : memref<32x32xbf16, #tpu.memory_space<vmem>>, vector<32x32xbf16>
      %cst_21 = arith.constant dense<0.000000e+00> : vector<8x32xf32>
      %35 = tpu.matmul %33, %34, %cst_21 {dimension_numbers = #tpu.dot_dimension_numbers<[1], [0], [0], [1], [0, 0, 1, 1], [], []>} : vector<8x32xbf16>, vector<32x32xbf16>, vector<8x32xf32> -> vector<8x32xf32>
      %c0_22 = arith.constant 0 : index
      %c0_23 = arith.constant 0 : index
      %36 = vector.load %arg9[%c0_22, %c0_23] : memref<1x32xf32, #tpu.memory_space<vmem>>, vector<1x32xf32>
      %37 = vector.broadcast %36 : vector<1x32xf32> to vector<8x32xf32>
      %38 = arith.addf %35, %37 : vector<8x32xf32>
      %c0_24 = arith.constant 0 : index
      %c0_25 = arith.constant 0 : index
      %c0_26 = arith.constant 0 : index
      %39 = vector.load %arg10[%c0_24, %c0_25, %c0_26] : memref<1x8x32xf32, #tpu.memory_space<vmem>>, vector<1x8x32xf32>
      %40 = vector.shape_cast %39 : vector<1x8x32xf32> to vector<8x32xf32>
      %41 = vector.shape_cast %38 : vector<8x32xf32> to vector<1x8x32xf32>
      tpu.vector_store %arg10[%c0_24, %c0_25, %c0_26], %41 {strides = array<i32>} : memref<1x8x32xf32, #tpu.memory_space<vmem>>, vector<1x8x32xf32>,
    } else {
    }
    return
  }
  func.func @transform_0(%arg0: i32, %arg1: i32, %arg2: i32) -> (i32, i32, i32) {
    %c0_i32 = arith.constant 0 : i32
    %c0_i32_0 = arith.constant 0 : i32
    return %arg0, %arg1, %c0_i32 : i32, i32, i32
  }
  func.func @transform_1(%arg0: i32, %arg1: i32, %arg2: i32) -> (i32, i32, i32) {
    %c0_i32 = arith.constant 0 : i32
    %c0_i32_0 = arith.constant 0 : i32
    return %arg0, %arg2, %c0_i32 : i32, i32, i32
  }
  func.func @transform_2(%arg0: i32, %arg1: i32, %arg2: i32) -> (i32, i32, i32) {
    %c0_i32 = arith.constant 0 : i32
    %c0_i32_0 = arith.constant 0 : i32
    return %arg0, %arg2, %c0_i32 : i32, i32, i32
  }
  func.func @transform_3(%arg0: i32, %arg1: i32, %arg2: i32) -> (i32, i32) {
    %c0_i32 = arith.constant 0 : i32
    %c0_i32_0 = arith.constant 0 : i32
    %c0_i32_1 = arith.constant 0 : i32
    return %c0_i32, %c0_i32_0 : i32, i32
  }
  func.func @transform_4(%arg0: i32, %arg1: i32, %arg2: i32) -> (i32, i32) {
    %c0_i32 = arith.constant 0 : i32
    %c0_i32_0 = arith.constant 0 : i32
    %c0_i32_1 = arith.constant 0 : i32
    return %c0_i32, %c0_i32_0 : i32, i32
  }
  func.func @transform_5(%arg0: i32, %arg1: i32, %arg2: i32) -> (i32, i32) {
    %c0_i32 = arith.constant 0 : i32
    %c0_i32_0 = arith.constant 0 : i32
    %c0_i32_1 = arith.constant 0 : i32
    return %c0_i32, %c0_i32_0 : i32, i32
  }
  func.func @transform_6(%arg0: i32, %arg1: i32, %arg2: i32) -> (i32, i32) {
    %c0_i32 = arith.constant 0 : i32
    %c0_i32_0 = arith.constant 0 : i32
    %c0_i32_1 = arith.constant 0 : i32
    return %c0_i32, %c0_i32_0 : i32, i32
  }
  func.func @transform_7(%arg0: i32, %arg1: i32, %arg2: i32) -> (i32, i32, i32) {
    %c0_i32 = arith.constant 0 : i32
    %c0_i32_0 = arith.constant 0 : i32
    return %arg0, %arg1, %c0_i32 : i32, i32, i32
  }
}

</mosaic_0001>

<llo_original>
// kernel: tpu_custom_call.1
$region0: #{tpu_custom_call.1}
  #allocation0 [shape = 'u32[]', space=smem, size = 0x4, offset = 0x4, fixed_abs, tag = 'smem constant byte address 0x4 - core index']
  #allocation1 [shape = 'u32[144,128]{1,0:T(1,128)}', space=vmem, size = 0x12000, scoped, tag = 'internal scratch']
  #allocation2 [shape = 'bf16[8,32]{1,0:T(8,128)(2,1)}', space=vmem, size = 0x800, scoped, tag = 'scratch operand']
  #allocation3 [shape = 'f32[8,32]{1,0:T(8,128)}', space=vmem, size = 0x1000, scoped, tag = 'scratch operand']
  %s0 = inlined_call_operand.hbm [shape: bf16[2,8,32], index: 0, kind: input, shape index: {}]
  %s1 = inlined_call_operand.hbm [shape: bf16[2,8,32], index: 1, kind: input, shape index: {}]
  %s2 = inlined_call_operand.hbm [shape: bf16[2,8,32], index: 2, kind: input, shape index: {}]
  %s3 = inlined_call_operand.hbm [shape: bf16[32,32], index: 3, kind: input, shape index: {}]
  %s4 = inlined_call_operand.vmem [shape: f32[1,32], index: 4, kind: input, shape index: {}]
  %s5 = inlined_call_operand.vmem [shape: bf16[32,32], index: 5, kind: input, shape index: {}]
  %s6 = inlined_call_operand.vmem [shape: f32[1,32], index: 6, kind: input, shape index: {}]
  %s7 = inlined_call_operand.hbm [shape: f32[2,8,32], index: 7, kind: output, shape index: {}]
  %s8 = sld [smem:[#allocation0]]
  $region85: #{tpu_custom_call.1} parent=0
    _
  %s10 = ssub.s32 1, %s8
  %s11 = scalar_select 0, %s10, %s8
  $region1: #{tpu_custom_call.1} parent=0
    #allocation4 [shape = 'u8[4096]{0}', space=vmem, size = 0x1000, scoped, tag = 'input window, operand 0']
    #allocation5 [shape = 's32[2]{0}', space=sflag, size = 0x8, scoped, tag = 'scoped memory for tpu_custom_call.1']
    #allocation6 [shape = 's32[2]{0}', space=sflag, size = 0x8, scoped, tag = 'scoped memory for tpu_custom_call.1']
    #allocation7 [shape = 'u8[4096]{0}', space=vmem, size = 0x1000, scoped, tag = 'input window, operand 1']
    #allocation8 [shape = 's32[2]{0}', space=sflag, size = 0x8, scoped, tag = 'scoped memory for tpu_custom_call.1']
    #allocation9 [shape = 'u8[4096]{0}', space=vmem, size = 0x1000, scoped, tag = 'input window, operand 2']
    #allocation10 [shape = 'u8[8192]{0}', space=vmem, size = 0x2000, scoped, tag = 'input window, operand 3, single buffered']
    #allocation11 [shape = 's32[1]{0}', space=sflag, size = 0x4, scoped, tag = 'scoped memory for tpu_custom_call.1']
    #allocation12 [shape = 'u8[8192]{0}', space=vmem, size = 0x2000, scoped, tag = 'output window, operand 0']
    %12 = vsyncpa [#allocation5], 0
    %s13 = scalar_lea.sflag [#allocation5], 1
    %14 = vsyncpa %s13, 0
    %15 = vsyncpa [#allocation8], 0
    %s16 = scalar_lea.sflag [#allocation8], 1
    %17 = vsyncpa %s16, 0
    %18 = vsyncpa [#allocation11], 0
    %19 = vsyncpa [#allocation6], 0
    %s20 = scalar_lea.sflag [#allocation6], 1
    %21 = vsyncpa %s20, 0
    loop: start=0, step=1, limit=4
    $region2: #{tpu_custom_call.1} parent=1 // loop_pre_header
      _
    $region3: #{tpu_custom_call.1} parent=1 // loop_header
      %s23 = sphi 0, %s27
      %p24 = scmp.ge.s32.totalorder %s23, 4
      %s30 = sphi 0, %s49
      %s31 = sphi 0, %s45
      %s32 = sphi 0, %s41
      %s33 = sphi 0, %s30
      %s34 = sphi 0, %s31
      %s35 = sphi 0, %s32
      %s36 = sphi 0, %s33
      %s37 = sphi 0, %s34
      %s38 = sphi 0, %s35
      %s54 = sphi 0, %s56
      %s57 = sphi 0, %s54
      %s58 = sphi 0, %s57
      %s74 = sphi 0, %s58
      %s82 = sphi 0, %s84
      %s85 = sphi 0, %s82
      %s86 = sphi 0, %s85
      %s102 = sphi 0, %s86
      %s110 = sphi 0, %s112
      %s113 = sphi 0, %s110
      %s114 = sphi 0, %s113
      %s130 = sphi 0, %s114
      %s134 = sphi 0, %s134
      %s136 = sphi 0, %s134
      %s137 = sphi 0, %s136
      %s151 = sphi 0, %s137
      %s155 = sphi 0, %s155
      %s157 = sphi 0, %s155
      %s158 = sphi 0, %s157
      %s172 = sphi 0, %s158
      %s176 = sphi 0, %s176
      %s178 = sphi 0, %s176
      %s179 = sphi 0, %s178
      %s193 = sphi 0, %s179
      %s197 = sphi 0, %s197
      %s199 = sphi 0, %s197
      %s200 = sphi 0, %s199
      %s214 = sphi 0, %s200
      %s222 = sphi 0, %s224
      %s225 = sphi 0, %s222
      %s226 = sphi 0, %s225
      %s242 = sphi 0, %s226
    $region4: #{tpu_custom_call.1} parent=1 // loop_header_branch
      %26 = sbr.rel (%p24) target = $region8
    $region5: #{tpu_custom_call.1} parent=1 // loop_body
      %s28 = ssub.s32 %s23, 1
      %s29 = ssub.s32 %s23, 2
      %s39 = sadd.s32 1, %s32
      %p40 = scmp.ge.s32.totalorder %s39, 1
      %s41 = scalar_select %p40, 0, %s39
      %s42 = sadd.s32 1, %s31
      %s43 = scalar_select %p40, %s42, %s31
      %p44 = scmp.ge.s32.totalorder %s43, 1
      %s45 = scalar_select %p44, 0, %s43
      %s46 = sadd.s32 1, %s30
      %s47 = scalar_select %p44, %s46, %s30
      %p48 = scmp.ge.s32.totalorder %s47, 2
      %s49 = scalar_select %p48, 0, %s47
      %s50 = ssub.s32 %s30, %s49
      %s51 = ssub.s32 %s31, %s45
      %s52 = sor.u32 %s50, %s51
      %p53 = scmp.eq.s32.totalorder %s52, 0
      %s55 = sadd.s32 %s54, 1
      %s56 = scalar_select %p53, %s54, %s55
      %p59 = pneg %p53
      %p60 = scmp.eq.s32.totalorder %s23, 1
      %p61 = por %p59, %p60
      %p62 = scmp.ne.s32.totalorder %s54, %s57
      %p63 = scmp.eq.s32.totalorder %s23, 0
      %p64 = por %p62, %p63
      %p65 = scmp.ne.s32.totalorder %s54, %s57
      %p66 = scmp.eq.s32.totalorder %s28, 1
      %p67 = por %p65, %p66
      %p68 = scmp.ne.s32.totalorder %s57, %s58
      %p69 = scmp.eq.s32.totalorder %s28, 0
      %p70 = por %p68, %p69
      %p71 = scmp.ne.s32.totalorder %s57, %s58
      %p72 = scmp.eq.s32.totalorder %s29, 1
      %p73 = por %p71, %p72
      %p75 = scmp.ne.s32.totalorder %s58, %s74
      %p76 = scmp.eq.s32.totalorder %s29, 0
      %p77 = por %p75, %p76
      %s78 = ssub.s32 %s30, %s49
      %s79 = ssub.s32 %s32, %s41
      %s80 = sor.u32 %s78, %s79
      %p81 = scmp.eq.s32.totalorder %s80, 0
      %s83 = sadd.s32 %s82, 1
      %s84 = scalar_select %p81, %s82, %s83
      %p87 = pneg %p81
      %p88 = scmp.eq.s32.totalorder %s23, 1
      %p89 = por %p87, %p88
      %p90 = scmp.ne.s32.totalorder %s82, %s85
      %p91 = scmp.eq.s32.totalorder %s23, 0
      %p92 = por %p90, %p91
      %p93 = scmp.ne.s32.totalorder %s82, %s85
      %p94 = scmp.eq.s32.totalorder %s28, 1
      %p95 = por %p93, %p94
      %p96 = scmp.ne.s32.totalorder %s85, %s86
      %p97 = scmp.eq.s32.totalorder %s28, 0
      %p98 = por %p96, %p97
      %p99 = scmp.ne.s32.totalorder %s85, %s86
      %p100 = scmp.eq.s32.totalorder %s29, 1
      %p101 = por %p99, %p100
      %p103 = scmp.ne.s32.totalorder %s86, %s102
      %p104 = scmp.eq.s32.totalorder %s29, 0
      %p105 = por %p103, %p104
      %s106 = ssub.s32 %s30, %s49
      %s107 = ssub.s32 %s32, %s41
      %s108 = sor.u32 %s106, %s107
      %p109 = scmp.eq.s32.totalorder %s108, 0
      %s111 = sadd.s32 %s110, 1
      %s112 = scalar_select %p109, %s110, %s111
      %p115 = pneg %p109
      %p116 = scmp.eq.s32.totalorder %s23, 1
      %p117 = por %p115, %p116
      %p118 = scmp.ne.s32.totalorder %s110, %s113
      %p119 = scmp.eq.s32.totalorder %s23, 0
      %p120 = por %p118, %p119
      %p121 = scmp.ne.s32.totalorder %s110, %s113
      %p122 = scmp.eq.s32.totalorder %s28, 1
      %p123 = por %p121, %p122
      %p124 = scmp.ne.s32.totalorder %s113, %s114
      %p125 = scmp.eq.s32.totalorder %s28, 0
      %p126 = por %p124, %p125
      %p127 = scmp.ne.s32.totalorder %s113, %s114
      %p128 = scmp.eq.s32.totalorder %s29, 1
      %p129 = por %p127, %p128
      %p131 = scmp.ne.s32.totalorder %s114, %s130
      %p132 = scmp.eq.s32.totalorder %s29, 0
      %p133 = por %p131, %p132
      %s135 = sadd.s32 %s134, 1
      %p138 = scmp.eq.s32.totalorder %s23, 1
      %p139 = scmp.ne.s32.totalorder %s134, %s136
      %p140 = scmp.eq.s32.totalorder %s23, 0
      %p141 = por %p139, %p140
      %p142 = scmp.ne.s32.totalorder %s134, %s136
      %p143 = scmp.eq.s32.totalorder %s28, 1
      %p144 = por %p142, %p143
      %p145 = scmp.ne.s32.totalorder %s136, %s137
      %p146 = scmp.eq.s32.totalorder %s28, 0
      %p147 = por %p145, %p146
      %p148 = scmp.ne.s32.totalorder %s136, %s137
      %p149 = scmp.eq.s32.totalorder %s29, 1
      %p150 = por %p148, %p149
      %p152 = scmp.ne.s32.totalorder %s137, %s151
      %p153 = scmp.eq.s32.totalorder %s29, 0
      %p154 = por %p152, %p153
      %s156 = sadd.s32 %s155, 1
      %p159 = scmp.eq.s32.totalorder %s23, 1
      %p160 = scmp.ne.s32.totalorder %s155, %s157
      %p161 = scmp.eq.s32.totalorder %s23, 0
      %p162 = por %p160, %p161
      %p163 = scmp.ne.s32.totalorder %s155, %s157
      %p164 = scmp.eq.s32.totalorder %s28, 1
      %p165 = por %p163, %p164
      %p166 = scmp.ne.s32.totalorder %s157, %s158
      %p167 = scmp.eq.s32.totalorder %s28, 0
      %p168 = por %p166, %p167
      %p169 = scmp.ne.s32.totalorder %s157, %s158
      %p170 = scmp.eq.s32.totalorder %s29, 1
      %p171 = por %p169, %p170
      %p173 = scmp.ne.s32.totalorder %s158, %s172
      %p174 = scmp.eq.s32.totalorder %s29, 0
      %p175 = por %p173, %p174
      %s177 = sadd.s32 %s176, 1
      %p180 = scmp.eq.s32.totalorder %s23, 1
      %p181 = scmp.ne.s32.totalorder %s176, %s178
      %p182 = scmp.eq.s32.totalorder %s23, 0
      %p183 = por %p181, %p182
      %p184 = scmp.ne.s32.totalorder %s176, %s178
      %p185 = scmp.eq.s32.totalorder %s28, 1
      %p186 = por %p184, %p185
      %p187 = scmp.ne.s32.totalorder %s178, %s179
      %p188 = scmp.eq.s32.totalorder %s28, 0
      %p189 = por %p187, %p188
      %p190 = scmp.ne.s32.totalorder %s178, %s179
      %p191 = scmp.eq.s32.totalorder %s29, 1
      %p192 = por %p190, %p191
      %p194 = scmp.ne.s32.totalorder %s179, %s193
      %p195 = scmp.eq.s32.totalorder %s29, 0
      %p196 = por %p194, %p195
      %s198 = sadd.s32 %s197, 1
      %p201 = scmp.eq.s32.totalorder %s23, 1
      %p202 = scmp.ne.s32.totalorder %s197, %s199
      %p203 = scmp.eq.s32.totalorder %s23, 0
      %p204 = por %p202, %p203
      %p205 = scmp.ne.s32.totalorder %s197, %s199
      %p206 = scmp.eq.s32.totalorder %s28, 1
      %p207 = por %p205, %p206
      %p208 = scmp.ne.s32.totalorder %s199, %s200
      %p209 = scmp.eq.s32.totalorder %s28, 0
      %p210 = por %p208, %p209
      %p211 = scmp.ne.s32.totalorder %s199, %s200
      %p212 = scmp.eq.s32.totalorder %s29, 1
      %p213 = por %p211, %p212
      %p215 = scmp.ne.s32.totalorder %s200, %s214
      %p216 = scmp.eq.s32.totalorder %s29, 0
      %p217 = por %p215, %p216
      %s218 = ssub.s32 %s30, %s49
      %s219 = ssub.s32 %s31, %s45
      %s220 = sor.u32 %s218, %s219
      %p221 = scmp.eq.s32.totalorder %s220, 0
      %s223 = sadd.s32 %s222, 1
      %s224 = scalar_select %p221, %s222, %s223
      %p227 = pneg %p221
      %p228 = scmp.eq.s32.totalorder %s23, 1
      %p229 = por %p227, %p228
      %p230 = scmp.ne.s32.totalorder %s222, %s225
      %p231 = scmp.eq.s32.totalorder %s23, 0
      %p232 = por %p230, %p231
      %p233 = scmp.ne.s32.totalorder %s222, %s225
      %p234 = scmp.eq.s32.totalorder %s28, 1
      %p235 = por %p233, %p234
      %p236 = scmp.ne.s32.totalorder %s225, %s226
      %p237 = scmp.eq.s32.totalorder %s28, 0
      %p238 = por %p236, %p237
      %p239 = scmp.ne.s32.totalorder %s225, %s226
      %p240 = scmp.eq.s32.totalorder %s29, 1
      %p241 = por %p239, %p240
      %p243 = scmp.ne.s32.totalorder %s226, %s242
      %p244 = scmp.eq.s32.totalorder %s29, 0
      %p245 = por %p243, %p244
      %p246 = scmp.le.s32.totalorder 1, %s23
      %p247 = scmp.lt.s32.totalorder %s23, 3
      %p248 = pnand %p246, %p247
      %p249 = pneg %p248
      // Predicated region
      $region9: #{tpu_custom_call.1} parent=5 // pred_check
        _
      $region10: #{tpu_custom_call.1} parent=5 // pred_check_branch
        %251 = sbr.rel (%p248) target = $region12
      $region11: #{tpu_custom_call.1} parent=5 // pred_region
        %s252 = ssub.s32 %s23, 1
        // Predicated region
        $region13: #{tpu_custom_call.1} parent=11 // pred_check
          %p253 = pneg %p147
        $region14: #{tpu_custom_call.1} parent=11 // pred_check_branch
          %255 = sbr.rel (%p253) target = $region16
        $region15: #{tpu_custom_call.1} parent=11 // pred_region
          %s257 = ssub.s32 256, 256
          %258 = vsyncadd [#allocation11], %s257
          %s259 = sshll.u32 [#allocation10], 4
          %s260 = int_to_ptr.vmem [resolvable:$true] %s259
          %265 = dma.hbm_to_vmem [thread:$0]  %s3, 256, %s260, [#allocation11], 64, 64, 4
        $region16: #{tpu_custom_call.1} parent=11 // pred_fallthru
          _
        // Predicated region
        $region17: #{tpu_custom_call.1} parent=11 // pred_check
          %p266 = pneg %p168
        $region18: #{tpu_custom_call.1} parent=11 // pred_check_branch
          %268 = sbr.rel (%p266) target = $region20
        $region19: #{tpu_custom_call.1} parent=11 // pred_region
          _
        $region20: #{tpu_custom_call.1} parent=11 // pred_fallthru
          _
        // Predicated region
        $region21: #{tpu_custom_call.1} parent=11 // pred_check
          %p269 = pneg %p189
        $region22: #{tpu_custom_call.1} parent=11 // pred_check_branch
          %271 = sbr.rel (%p269) target = $region24
        $region23: #{tpu_custom_call.1} parent=11 // pred_region
          _
        $region24: #{tpu_custom_call.1} parent=11 // pred_fallthru
          _
        // Predicated region
        $region25: #{tpu_custom_call.1} parent=11 // pred_check
          %p272 = pneg %p210
        $region26: #{tpu_custom_call.1} parent=11 // pred_check_branch
          %274 = sbr.rel (%p272) target = $region28
        $region27: #{tpu_custom_call.1} parent=11 // pred_region
          _
        $region28: #{tpu_custom_call.1} parent=11 // pred_fallthru
          _
      $region12: #{tpu_custom_call.1} parent=5 // pred_fallthru
        _
      %p275 = scmp.lt.s32.totalorder %s23, 2
      // Predicated region
      $region29: #{tpu_custom_call.1} parent=5 // pred_check
        %p276 = pneg %p275
      $region30: #{tpu_custom_call.1} parent=5 // pred_check_branch
        %278 = sbr.rel (%p276) target = $region32
      $region31: #{tpu_custom_call.1} parent=5 // pred_region
        // Predicated region
        $region33: #{tpu_custom_call.1} parent=31 // pred_check
          %p279 = pneg %p64
        $region34: #{tpu_custom_call.1} parent=31 // pred_check_branch
          %281 = sbr.rel (%p279) target = $region36
        $region35: #{tpu_custom_call.1} parent=31 // pred_region
          %s282 = sand.u32 %s54, 1
          %s283 = scalar_lea.sflag [#allocation5], %s282
          %s284 = sand.u32 %s54, 1
          %s285 = smul.addr %s284, 4
          %s286 = scalar_lea.vmem [#allocation4], %s285
          %s288 = ssub.s32 64, 64
          %289 = vsyncadd %s283, %s288
          %s290 = sadd.s32 %s31, %s30
          %s291 = smul.addr %s290, 64
          %s292 = scalar_lea.hbm %s0, %s291
          %s294 = sshll.u32 %s286, 4
          %s295 = int_to_ptr.vmem [resolvable:$true] %s294
          %297 = dma.hbm_to_vmem [thread:$0]  %s292, 64, %s295, %s283
        $region36: #{tpu_custom_call.1} parent=31 // pred_fallthru
          _
        // Predicated region
        $region37: #{tpu_custom_call.1} parent=31 // pred_check
          %p298 = pneg %p92
        $region38: #{tpu_custom_call.1} parent=31 // pred_check_branch
          %300 = sbr.rel (%p298) target = $region40
        $region39: #{tpu_custom_call.1} parent=31 // pred_region
          %s301 = sand.u32 %s23, 1
          %s302 = scalar_lea.sflag [#allocation8], %s301
          %s303 = sand.u32 %s82, 1
          %s304 = smul.addr %s303, 4
          %s305 = scalar_lea.vmem [#allocation7], %s304
          %s307 = ssub.s32 64, 64
          %308 = vsyncadd %s302, %s307
          %s309 = sadd.s32 %s32, %s30
          %s310 = smul.addr %s309, 64
          %s311 = scalar_lea.hbm %s1, %s310
          %s313 = sshll.u32 %s305, 4
          %s314 = int_to_ptr.vmem [resolvable:$true] %s313
          %316 = dma.hbm_to_vmem [thread:$0]  %s311, 64, %s314, %s302
        $region40: #{tpu_custom_call.1} parent=31 // pred_fallthru
          _
        // Predicated region
        $region41: #{tpu_custom_call.1} parent=31 // pred_check
          %p317 = pneg %p120
        $region42: #{tpu_custom_call.1} parent=31 // pred_check_branch
          %319 = sbr.rel (%p317) target = $region44
        $region43: #{tpu_custom_call.1} parent=31 // pred_region
          %s320 = sand.u32 %s23, 1
          %s321 = scalar_lea.sflag [#allocation8], %s320
          %s322 = sand.u32 %s110, 1
          %s323 = smul.addr %s322, 4
          %s324 = scalar_lea.vmem [#allocation9], %s323
          %s326 = ssub.s32 64, 64
          %327 = vsyncadd %s321, %s326
          %s328 = sadd.s32 %s32, %s30
          %s329 = smul.addr %s328, 64
          %s330 = scalar_lea.hbm %s2, %s329
          %s332 = sshll.u32 %s324, 4
          %s333 = int_to_ptr.vmem [resolvable:$true] %s332
          %335 = dma.hbm_to_vmem [thread:$0]  %s330, 64, %s333, %s321
        $region44: #{tpu_custom_call.1} parent=31 // pred_fallthru
          _
      $region32: #{tpu_custom_call.1} parent=5 // pred_fallthru
        _
      %p336 = scmp.le.s32.totalorder 1, %s23
      %p337 = scmp.lt.s32.totalorder %s23, 3
      %p338 = pnand %p336, %p337
      %p339 = pneg %p338
      // Predicated region
      $region45: #{tpu_custom_call.1} parent=5 // pred_check
        _
      $region46: #{tpu_custom_call.1} parent=5 // pred_check_branch
        %341 = sbr.rel (%p338) target = $region48
      $region47: #{tpu_custom_call.1} parent=5 // pred_region
        %s342 = ssub.s32 %s23, 1
        %s343 = sand.u32 %s57, 1
        %s344 = scalar_lea.sflag [#allocation5], %s343
        %s345 = sand.u32 %s57, 1
        %s346 = smul.addr %s345, 4
        %s347 = scalar_lea.vmem [#allocation4], %s346
        // Predicated region
        $region49: #{tpu_custom_call.1} parent=47 // pred_check
          %p348 = pneg %p70
        $region50: #{tpu_custom_call.1} parent=47 // pred_check_branch
          %350 = sbr.rel (%p348) target = $region52
        $region51: #{tpu_custom_call.1} parent=47 // pred_region
          %351 = dma.done %s344, 64
        $region52: #{tpu_custom_call.1} parent=47 // pred_fallthru
          _
        %s352 = sand.u32 %s28, 1
        %s353 = scalar_lea.sflag [#allocation8], %s352
        %s354 = sand.u32 %s85, 1
        %s355 = smul.addr %s354, 4
        %s356 = scalar_lea.vmem [#allocation7], %s355
        // Predicated region
        $region53: #{tpu_custom_call.1} parent=47 // pred_check
          %p357 = pneg %p98
        $region54: #{tpu_custom_call.1} parent=47 // pred_check_branch
          %359 = sbr.rel (%p357) target = $region56
        $region55: #{tpu_custom_call.1} parent=47 // pred_region
          %360 = dma.done %s353, 64
        $region56: #{tpu_custom_call.1} parent=47 // pred_fallthru
          _
        %s361 = sand.u32 %s28, 1
        %s362 = scalar_lea.sflag [#allocation8], %s361
        %s363 = sand.u32 %s113, 1
        %s364 = smul.addr %s363, 4
        %s365 = scalar_lea.vmem [#allocation9], %s364
        // Predicated region
        $region57: #{tpu_custom_call.1} parent=47 // pred_check
          %p366 = pneg %p126
        $region58: #{tpu_custom_call.1} parent=47 // pred_check_branch
          %368 = sbr.rel (%p366) target = $region60
        $region59: #{tpu_custom_call.1} parent=47 // pred_region
          %369 = dma.done %s362, 64
        $region60: #{tpu_custom_call.1} parent=47 // pred_fallthru
          _
        // Predicated region
        $region61: #{tpu_custom_call.1} parent=47 // pred_check
          %p370 = pneg %p147
        $region62: #{tpu_custom_call.1} parent=47 // pred_check_branch
          %372 = sbr.rel (%p370) target = $region64
        $region63: #{tpu_custom_call.1} parent=47 // pred_region
          %373 = dma.done [#allocation11], 256
        $region64: #{tpu_custom_call.1} parent=47 // pred_fallthru
          _
        %s374 = sand.u32 %s57, 1
        %s375 = scalar_lea.sflag [#allocation5], %s374
        %s376 = sand.u32 %s57, 1
        %s377 = smul.addr %s376, 4
        %s378 = scalar_lea.vmem [#allocation4], %s377
        %p379 = pneg %p70
        %p380 = pneg %p67
        %s381 = sand.u32 %s28, 1
        %s382 = scalar_lea.sflag [#allocation8], %s381
        %s383 = sand.u32 %s85, 1
        %s384 = smul.addr %s383, 4
        %s385 = scalar_lea.vmem [#allocation7], %s384
        %p386 = pneg %p98
        %p387 = pneg %p95
        %s388 = sand.u32 %s28, 1
        %s389 = scalar_lea.sflag [#allocation8], %s388
        %s390 = sand.u32 %s113, 1
        %s391 = smul.addr %s390, 4
        %s392 = scalar_lea.vmem [#allocation9], %s391
        %p393 = pneg %p126
        %p394 = pneg %p123
        %p395 = pneg %p147
        %p396 = pneg %p144
        %p397 = pneg %p168
        %p398 = pneg %p165
        %p399 = pneg %p189
        %p400 = pneg %p186
        %p401 = pneg %p210
        %p402 = pneg %p207
        %p403 = pneg %p238
        %p404 = pneg %p235
        %s405 = sand.u32 %s225, 1
        %s406 = scalar_lea.sflag [#allocation6], %s405
        %s407 = sand.u32 %s225, 1
        %s408 = smul.addr %s407, 8
        %s409 = scalar_lea.vmem [#allocation12], %s408
        %p411 = scmp.eq.s32.totalorder %s35, 0
        // Predicated region
        $region65: #{tpu_custom_call.1} parent=47 // pred_check
          %p412 = pneg %p411
        $region66: #{tpu_custom_call.1} parent=47 // pred_check_branch
          %414 = sbr.rel (%p412) target = $region68
        $region67: #{tpu_custom_call.1} parent=47 // pred_region
          %v415 = vld [vmem:[%s347] sm:$0xf]
          %v416 = vld [vmem:[#allocation10] sm:$0xf]
          %v417 = vld [vmem:[#allocation10 + $0x4] sm:$0xf]
          %v418 = vld [vmem:[#allocation10 + $0x8] sm:$0xf]
          %v419 = vld [vmem:[#allocation10 + $0xc] sm:$0xf]
          %v420 = vld [vmem:[%s4] sm:$0x1]
          %v422 = vlaneseq
          %v423 = vshrl.u32 %v422, 7
          %v424 = vsub.s32 0, %v423
          %v425 = vrot.slane %v420, %v424
          %v431 = vunpack.c.l.b16 %v416
          %v432 = vunpack.c.l.b16 %v417
          %v433 = vunpack.c.l.b16 %v418
          %v434 = vunpack.c.l.b16 %v419
          %v435 = vpack.c.b16 %v432, %v431
          %v436 = vpack.c.b16 %v434, %v433
          %vm439 = vcmask 261120
          %v441 = vsel %vm439, %v415, 0
          %443 = vmatprep.subr.bf16.mxu0 0
          %444 = vmatpush1.bf16.msra.mxu0 %v435
          %445 = vmatprep.subr.bf16.mxu0 0
          %446 = vmatpush1.bf16.msra.mxu0 %v436
          %447 = vmatprep.subr.bf16.mxu0 0
          %448 = vmatpush1.bf16.msra.mxu0 0
          %449 = vmatprep.subr.bf16.mxu0 0
          %450 = vmatpush1.bf16.msra.mxu0 0
          %451 = vmatprep.subr.bf16.mxu0 0
          %452 = vmatpush1.bf16.msra.mxu0 0
          %453 = vmatprep.subr.bf16.mxu0 0
          %454 = vmatpush1.bf16.msra.mxu0 0
          %455 = vmatprep.subr.bf16.mxu0 0
          %456 = vmatpush1.bf16.msra.mxu0 0
          %457 = vmatprep.subr.bf16.mxu0 0
          %458 = vmatpush1.bf16.msra.mxu0 0
          %459 = vmatprep.subr.bf16.mxu0 0
          %460 = vmatpush1.bf16.msra.mxu0 0
          %461 = vmatprep.subr.bf16.mxu0 0
          %462 = vmatpush1.bf16.msra.mxu0 0
          %463 = vmatprep.subr.bf16.mxu0 0
          %464 = vmatpush1.bf16.msra.mxu0 0
          %465 = vmatprep.subr.bf16.mxu0 0
          %466 = vmatpush1.bf16.msra.mxu0 0
          %467 = vmatprep.subr.bf16.mxu0 0
          %468 = vmatpush1.bf16.msra.mxu0 0
          %469 = vmatprep.subr.bf16.mxu0 0
          %470 = vmatpush1.bf16.msra.mxu0 0
          %471 = vmatprep.subr.bf16.mxu0 0
          %472 = vmatpush1.bf16.msra.mxu0 0
          %473 = vmatprep.subr.bf16.mxu0 0
          %474 = vmatpush1.bf16.msra.mxu0 0
          %475 = vmatprep.mubr.bf16.mxu0 0
          %476 = vmatmul.mubr.bf16.gmra.mrb[0].mxu0 %v441
          %v477 = vpop.f32.mrb[0].mxu0
          %v478 = vadd.f32 %v425, %v477
          %v479 = vpop.f32.mrb[0].mxu0
          %v480 = vpop.f32.mrb[0].mxu0
          %v481 = vpop.f32.mrb[0].mxu0
          %482 = vdwg.mxu0
          %v483 = vmul.f32 %v478, 0.35355338
          %v484 = vpack.c.bf16 %v483, %v483
          %vm485 = vcmask 257024
          %486 = vst.msk [vmem:[#allocation2] sm:$0xf] %vm485, %v484
          %487 = vst.msk [vmem:[#allocation3] sm:$0xff] %vm439, 0.0
        $region68: #{tpu_custom_call.1} parent=47 // pred_fallthru
          _
        %v488 = vld [vmem:[#allocation2] sm:$0xf]
        %490 = vrot.lane.b32.xlu0 %v488, 120
        %v491 = vpop.permute.xlu0 %490
        %492 = vrot.lane.b32.xlu0 %v488, 112
        %v493 = vpop.permute.xlu0 %492
        %494 = vrot.lane.b32.xlu0 %v488, 104
        %v495 = vpop.permute.xlu0 %494
        %v496 = vld [vmem:[%s356] sm:$0xf]
        %498 = vrot.lane.b32.xlu0 %v496, 120
        %v499 = vpop.permute.xlu0 %498
        %500 = vrot.lane.b32.xlu0 %v496, 112
        %v501 = vpop.permute.xlu0 %500
        %502 = vrot.lane.b32.xlu0 %v496, 104
        %v503 = vpop.permute.xlu0 %502
        %v506 = vpack.i.b16 %v499, %v496
        %v507 = vshrl.u32 %v496, 16
        %v508 = vshrl.u32 %v499, 16
        %v509 = vpack.i.b16 %v508, %v507
        %v512 = vpack.i.b16 %v503, %v501
        %v513 = vshrl.u32 %v501, 16
        %v514 = vshrl.u32 %v503, 16
        %v515 = vpack.i.b16 %v514, %v513
        %v518 = vunpack.c.l.s4 1983009808
        %v519 = vunpack.c.0.s8 %v518
        %v520 = vlaneseq
        %v521 = vshrl.u32 %v520, 7
        %v522 = vsub.s32 %v519, %v521
        %v523 = vrot.slane %v506, %v522
        %v526 = vunpack.c.l.s4 1983009808
        %v527 = vunpack.c.0.s8 %v526
        %v528 = vlaneseq
        %v529 = vshrl.u32 %v528, 7
        %v530 = vsub.s32 %v527, %v529
        %v531 = vrot.slane %v512, %v530
        %v532 = vcombine.low %v523, %v531
        %v533 = vcombine.high %v523, %v531
        %v535 = vunpack.c.l.s4 1934713408
        %v536 = vunpack.c.0.s8 %v535
        %v537 = vlaneseq
        %v538 = vshrl.u32 %v537, 7
        %v539 = vsub.s32 %v536, %v538
        %v540 = vrot.slane %v532, %v539
        %v542 = vunpack.c.l.s4 1934713408
        %v543 = vunpack.c.0.s8 %v542
        %v544 = vlaneseq
        %v545 = vshrl.u32 %v544, 7
        %v546 = vsub.s32 %v543, %v545
        %v547 = vrot.slane %v533, %v546
        %v548 = vcombine.high %v540, 0
        %v549 = vcombine.high %v547, 0
        %v552 = vunpack.c.l.s4 1983009808
        %v553 = vunpack.c.0.s8 %v552
        %v554 = vlaneseq
        %v555 = vshrl.u32 %v554, 7
        %v556 = vsub.s32 %v553, %v555
        %v557 = vrot.slane %v509, %v556
        %v560 = vunpack.c.l.s4 1983009808
        %v561 = vunpack.c.0.s8 %v560
        %v562 = vlaneseq
        %v563 = vshrl.u32 %v562, 7
        %v564 = vsub.s32 %v561, %v563
        %v565 = vrot.slane %v515, %v564
        %v566 = vcombine.low %v557, %v565
        %v567 = vcombine.high %v557, %v565
        %v569 = vunpack.c.l.s4 1934713408
        %v570 = vunpack.c.0.s8 %v569
        %v571 = vlaneseq
        %v572 = vshrl.u32 %v571, 7
        %v573 = vsub.s32 %v570, %v572
        %v574 = vrot.slane %v566, %v573
        %v576 = vunpack.c.l.s4 1934713408
        %v577 = vunpack.c.0.s8 %v576
        %v578 = vlaneseq
        %v579 = vshrl.u32 %v578, 7
        %v580 = vsub.s32 %v577, %v579
        %v581 = vrot.slane %v567, %v580
        %v582 = vcombine.high %v574, 0
        %v583 = vcombine.high %v581, 0
        %v584 = vld [vmem:[%s365] sm:$0xf]
        %586 = vrot.lane.b32.xlu0 %v584, 120
        %v587 = vpop.permute.xlu0 %586
        %588 = vrot.lane.b32.xlu0 %v584, 112
        %v589 = vpop.permute.xlu0 %588
        %590 = vrot.lane.b32.xlu0 %v584, 104
        %v591 = vpop.permute.xlu0 %590
        %v594 = vpack.i.b16 %v587, %v584
        %v595 = vshrl.u32 %v584, 16
        %v596 = vshrl.u32 %v587, 16
        %v597 = vpack.i.b16 %v596, %v595
        %v600 = vpack.i.b16 %v591, %v589
        %v601 = vshrl.u32 %v589, 16
        %v602 = vshrl.u32 %v591, 16
        %v603 = vpack.i.b16 %v602, %v601
        %v606 = vunpack.c.l.s4 1983009808
        %v607 = vunpack.c.0.s8 %v606
        %v608 = vlaneseq
        %v609 = vshrl.u32 %v608, 7
        %v610 = vsub.s32 %v607, %v609
        %v611 = vrot.slane %v594, %v610
        %v614 = vunpack.c.l.s4 1983009808
        %v615 = vunpack.c.0.s8 %v614
        %v616 = vlaneseq
        %v617 = vshrl.u32 %v616, 7
        %v618 = vsub.s32 %v615, %v617
        %v619 = vrot.slane %v600, %v618
        %v620 = vcombine.low %v611, %v619
        %v621 = vcombine.high %v611, %v619
        %v623 = vunpack.c.l.s4 1934713408
        %v624 = vunpack.c.0.s8 %v623
        %v625 = vlaneseq
        %v626 = vshrl.u32 %v625, 7
        %v627 = vsub.s32 %v624, %v626
        %v628 = vrot.slane %v620, %v627
        %v630 = vunpack.c.l.s4 1934713408
        %v631 = vunpack.c.0.s8 %v630
        %v632 = vlaneseq
        %v633 = vshrl.u32 %v632, 7
        %v634 = vsub.s32 %v631, %v633
        %v635 = vrot.slane %v621, %v634
        %v636 = vcombine.high %v628, 0
        %v637 = vcombine.high %v635, 0
        %v640 = vunpack.c.l.s4 1983009808
        %v641 = vunpack.c.0.s8 %v640
        %v642 = vlaneseq
        %v643 = vshrl.u32 %v642, 7
        %v644 = vsub.s32 %v641, %v643
        %v645 = vrot.slane %v597, %v644
        %v648 = vunpack.c.l.s4 1983009808
        %v649 = vunpack.c.0.s8 %v648
        %v650 = vlaneseq
        %v651 = vshrl.u32 %v650, 7
        %v652 = vsub.s32 %v649, %v651
        %v653 = vrot.slane %v603, %v652
        %v654 = vcombine.low %v645, %v653
        %v655 = vcombine.high %v645, %v653
        %v657 = vunpack.c.l.s4 1934713408
        %v658 = vunpack.c.0.s8 %v657
        %v659 = vlaneseq
        %v660 = vshrl.u32 %v659, 7
        %v661 = vsub.s32 %v658, %v660
        %v662 = vrot.slane %v654, %v661
        %v664 = vunpack.c.l.s4 1934713408
        %v665 = vunpack.c.0.s8 %v664
        %v666 = vlaneseq
        %v667 = vshrl.u32 %v666, 7
        %v668 = vsub.s32 %v665, %v667
        %v669 = vrot.slane %v655, %v668
        %v670 = vcombine.high %v662, 0
        %v671 = vcombine.high %v669, 0
        %672 = vxpose.xlu0.c.b16.start [1/8] %v540, 128
        %673 = vxpose.xlu0.c.b16.cont [2/8] 0, 128
        %674 = vxpose.xlu0.c.b16.cont [3/8] 0, 128
        %675 = vxpose.xlu0.c.b16.cont [4/8] 0, 128
        %676 = vxpose.xlu0.c.b16.cont [5/8] 0, 128
        %677 = vxpose.xlu0.c.b16.cont [6/8] 0, 128
        %678 = vxpose.xlu0.c.b16.cont [7/8] 0, 128
        %679 = vxpose.xlu0.c.b16.end [8/8] 0, 128
        %v680 = vpop.trf.xlu0
        %v681 = vpop.trf.xlu0
        %v682 = vpop.trf.xlu0
        %v683 = vpop.trf.xlu0
        %v684 = vpop.trf.xlu0
        %v685 = vpop.trf.xlu0
        %v686 = vpop.trf.xlu0
        %v687 = vpop.trf.xlu0
        %688 = vxpose.xlu0.c.b16.start [1/8] %v574, 128
        %689 = vxpose.xlu0.c.b16.cont [2/8] 0, 128
        %690 = vxpose.xlu0.c.b16.cont [3/8] 0, 128
        %691 = vxpose.xlu0.c.b16.cont [4/8] 0, 128
        %692 = vxpose.xlu0.c.b16.cont [5/8] 0, 128
        %693 = vxpose.xlu0.c.b16.cont [6/8] 0, 128
        %694 = vxpose.xlu0.c.b16.cont [7/8] 0, 128
        %695 = vxpose.xlu0.c.b16.end [8/8] 0, 128
        %v696 = vpop.trf.xlu0
        %v697 = vpop.trf.xlu0
        %v698 = vpop.trf.xlu0
        %v699 = vpop.trf.xlu0
        %v700 = vpop.trf.xlu0
        %v701 = vpop.trf.xlu0
        %v702 = vpop.trf.xlu0
        %v703 = vpop.trf.xlu0
        %704 = vxpose.xlu0.c.b16.start [1/8] %v548, 128
        %705 = vxpose.xlu0.c.b16.cont [2/8] 0, 128
        %706 = vxpose.xlu0.c.b16.cont [3/8] 0, 128
        %707 = vxpose.xlu0.c.b16.cont [4/8] 0, 128
        %708 = vxpose.xlu0.c.b16.cont [5/8] 0, 128
        %709 = vxpose.xlu0.c.b16.cont [6/8] 0, 128
        %710 = vxpose.xlu0.c.b16.cont [7/8] 0, 128
        %711 = vxpose.xlu0.c.b16.end [8/8] 0, 128
        %v712 = vpop.trf.xlu0
        %v713 = vpop.trf.xlu0
        %v714 = vpop.trf.xlu0
        %v715 = vpop.trf.xlu0
        %v716 = vpop.trf.xlu0
        %v717 = vpop.trf.xlu0
        %v718 = vpop.trf.xlu0
        %v719 = vpop.trf.xlu0
        %720 = vxpose.xlu0.c.b16.start [1/8] %v582, 128
        %721 = vxpose.xlu0.c.b16.cont [2/8] 0, 128
        %722 = vxpose.xlu0.c.b16.cont [3/8] 0, 128
        %723 = vxpose.xlu0.c.b16.cont [4/8] 0, 128
        %724 = vxpose.xlu0.c.b16.cont [5/8] 0, 128
        %725 = vxpose.xlu0.c.b16.cont [6/8] 0, 128
        %726 = vxpose.xlu0.c.b16.cont [7/8] 0, 128
        %727 = vxpose.xlu0.c.b16.end [8/8] 0, 128
        %v728 = vpop.trf.xlu0
        %v729 = vpop.trf.xlu0
        %v730 = vpop.trf.xlu0
        %v731 = vpop.trf.xlu0
        %v732 = vpop.trf.xlu0
        %v733 = vpop.trf.xlu0
        %v734 = vpop.trf.xlu0
        %v735 = vpop.trf.xlu0
        %736 = vxpose.xlu0.c.b16.start [1/8] %v547, 128
        %737 = vxpose.xlu0.c.b16.cont [2/8] 0, 128
        %738 = vxpose.xlu0.c.b16.cont [3/8] 0, 128
        %739 = vxpose.xlu0.c.b16.cont [4/8] 0, 128
        %740 = vxpose.xlu0.c.b16.cont [5/8] 0, 128
        %741 = vxpose.xlu0.c.b16.cont [6/8] 0, 128
        %742 = vxpose.xlu0.c.b16.cont [7/8] 0, 128
        %743 = vxpose.xlu0.c.b16.end [8/8] 0, 128
        %v744 = vpop.trf.xlu0
        %v745 = vpop.trf.xlu0
        %v746 = vpop.trf.xlu0
        %v747 = vpop.trf.xlu0
        %v748 = vpop.trf.xlu0
        %v749 = vpop.trf.xlu0
        %v750 = vpop.trf.xlu0
        %v751 = vpop.trf.xlu0
        %752 = vxpose.xlu0.c.b16.start [1/8] %v581, 128
        %753 = vxpose.xlu0.c.b16.cont [2/8] 0, 128
        %754 = vxpose.xlu0.c.b16.cont [3/8] 0, 128
        %755 = vxpose.xlu0.c.b16.cont [4/8] 0, 128
        %756 = vxpose.xlu0.c.b16.cont [5/8] 0, 128
        %757 = vxpose.xlu0.c.b16.cont [6/8] 0, 128
        %758 = vxpose.xlu0.c.b16.cont [7/8] 0, 128
        %759 = vxpose.xlu0.c.b16.end [8/8] 0, 128
        %v760 = vpop.trf.xlu0
        %v761 = vpop.trf.xlu0
        %v762 = vpop.trf.xlu0
        %v763 = vpop.trf.xlu0
        %v764 = vpop.trf.xlu0
        %v765 = vpop.trf.xlu0
        %v766 = vpop.trf.xlu0
        %v767 = vpop.trf.xlu0
        %768 = vxpose.xlu0.c.b16.start [1/8] %v549, 128
        %769 = vxpose.xlu0.c.b16.cont [2/8] 0, 128
        %770 = vxpose.xlu0.c.b16.cont [3/8] 0, 128
        %771 = vxpose.xlu0.c.b16.cont [4/8] 0, 128
        %772 = vxpose.xlu0.c.b16.cont [5/8] 0, 128
        %773 = vxpose.xlu0.c.b16.cont [6/8] 0, 128
        %774 = vxpose.xlu0.c.b16.cont [7/8] 0, 128
        %775 = vxpose.xlu0.c.b16.end [8/8] 0, 128
        %v776 = vpop.trf.xlu0
        %v777 = vpop.trf.xlu0
        %v778 = vpop.trf.xlu0
        %v779 = vpop.trf.xlu0
        %v780 = vpop.trf.xlu0
        %v781 = vpop.trf.xlu0
        %v782 = vpop.trf.xlu0
        %v783 = vpop.trf.xlu0
        %784 = vxpose.xlu0.c.b16.start [1/8] %v583, 128
        %785 = vxpose.xlu0.c.b16.cont [2/8] 0, 128
        %786 = vxpose.xlu0.c.b16.cont [3/8] 0, 128
        %787 = vxpose.xlu0.c.b16.cont [4/8] 0, 128
        %788 = vxpose.xlu0.c.b16.cont [5/8] 0, 128
        %789 = vxpose.xlu0.c.b16.cont [6/8] 0, 128
        %790 = vxpose.xlu0.c.b16.cont [7/8] 0, 128
        %791 = vxpose.xlu0.c.b16.end [8/8] 0, 128
        %v792 = vpop.trf.xlu0
        %v793 = vpop.trf.xlu0
        %v794 = vpop.trf.xlu0
        %v795 = vpop.trf.xlu0
        %v796 = vpop.trf.xlu0
        %v797 = vpop.trf.xlu0
        %v798 = vpop.trf.xlu0
        %v799 = vpop.trf.xlu0
        %v800 = vcombine.low %v680, %v744
        %v802 = vunpack.c.l.s4 1983009808
        %v803 = vunpack.c.0.s8 %v802
        %v804 = vlaneseq
        %v805 = vshrl.u32 %v804, 7
        %v806 = vsub.s32 %v803, %v805
        %v807 = vrot.slane %v800, %v806
        %v808 = vcombine.low %v712, %v776
        %v810 = vunpack.c.l.s4 1983009808
        %v811 = vunpack.c.0.s8 %v810
        %v812 = vlaneseq
        %v813 = vshrl.u32 %v812, 7
        %v814 = vsub.s32 %v811, %v813
        %v815 = vrot.slane %v808, %v814
        %v816 = vcombine.low %v807, %v815
        %v817 = vcombine.high %v807, %v815
        %v819 = vunpack.c.l.s4 1934713408
        %v820 = vunpack.c.0.s8 %v819
        %v821 = vlaneseq
        %v822 = vshrl.u32 %v821, 7
        %v823 = vsub.s32 %v820, %v822
        %v824 = vrot.slane %v816, %v823
        %v826 = vunpack.c.l.s4 1934713408
        %v827 = vunpack.c.0.s8 %v826
        %v828 = vlaneseq
        %v829 = vshrl.u32 %v828, 7
        %v830 = vsub.s32 %v827, %v829
        %v831 = vrot.slane %v817, %v830
        %v832 = vcombine.high %v824, 0
        %v833 = vcombine.high %v831, 0
        %v834 = vcombine.low %v696, %v760
        %v836 = vunpack.c.l.s4 1983009808
        %v837 = vunpack.c.0.s8 %v836
        %v838 = vlaneseq
        %v839 = vshrl.u32 %v838, 7
        %v840 = vsub.s32 %v837, %v839
        %v841 = vrot.slane %v834, %v840
        %v842 = vcombine.low %v728, %v792
        %v844 = vunpack.c.l.s4 1983009808
        %v845 = vunpack.c.0.s8 %v844
        %v846 = vlaneseq
        %v847 = vshrl.u32 %v846, 7
        %v848 = vsub.s32 %v845, %v847
        %v849 = vrot.slane %v842, %v848
        %v850 = vcombine.low %v841, %v849
        %v851 = vcombine.high %v841, %v849
        %v853 = vunpack.c.l.s4 1934713408
        %v854 = vunpack.c.0.s8 %v853
        %v855 = vlaneseq
        %v856 = vshrl.u32 %v855, 7
        %v857 = vsub.s32 %v854, %v856
        %v858 = vrot.slane %v850, %v857
        %v860 = vunpack.c.l.s4 1934713408
        %v861 = vunpack.c.0.s8 %v860
        %v862 = vlaneseq
        %v863 = vshrl.u32 %v862, 7
        %v864 = vsub.s32 %v861, %v863
        %v865 = vrot.slane %v851, %v864
        %v866 = vcombine.high %v858, 0
        %v867 = vcombine.high %v865, 0
        %v870 = vpack.i.b16 %v858, %v824
        %v872 = vshrl.u32 %v824, 16
        %v873 = vshrl.u32 %v858, 16
        %v874 = vpack.i.b16 %v873, %v872
        %v878 = vpack.i.b16 %v866, %v832
        %v880 = vshrl.u32 %v832, 16
        %v881 = vshrl.u32 %v866, 16
        %v882 = vpack.i.b16 %v881, %v880
        %v886 = vpack.i.b16 %v865, %v831
        %v888 = vshrl.u32 %v831, 16
        %v889 = vshrl.u32 %v865, 16
        %v890 = vpack.i.b16 %v889, %v888
        %v894 = vpack.i.b16 %v867, %v833
        %v896 = vshrl.u32 %v833, 16
        %v897 = vshrl.u32 %v867, 16
        %v898 = vpack.i.b16 %v897, %v896
        %900 = vxpose.xlu0.c.b16.start [1/8] %v870, 128
        %901 = vxpose.xlu0.c.b16.cont [2/8] 0, 128
        %902 = vxpose.xlu0.c.b16.cont [3/8] 0, 128
        %903 = vxpose.xlu0.c.b16.cont [4/8] 0, 128
        %904 = vxpose.xlu0.c.b16.cont [5/8] 0, 128
        %905 = vxpose.xlu0.c.b16.cont [6/8] 0, 128
        %906 = vxpose.xlu0.c.b16.cont [7/8] 0, 128
        %907 = vxpose.xlu0.c.b16.end [8/8] 0, 128
        %v908 = vpop.trf.xlu0
        %v909 = vpop.trf.xlu0
        %v910 = vpop.trf.xlu0
        %v911 = vpop.trf.xlu0
        %v912 = vpop.trf.xlu0
        %v913 = vpop.trf.xlu0
        %v914 = vpop.trf.xlu0
        %v915 = vpop.trf.xlu0
        %916 = vxpose.xlu0.c.b16.start [1/8] %v874, 128
        %917 = vxpose.xlu0.c.b16.cont [2/8] 0, 128
        %918 = vxpose.xlu0.c.b16.cont [3/8] 0, 128
        %919 = vxpose.xlu0.c.b16.cont [4/8] 0, 128
        %920 = vxpose.xlu0.c.b16.cont [5/8] 0, 128
        %921 = vxpose.xlu0.c.b16.cont [6/8] 0, 128
        %922 = vxpose.xlu0.c.b16.cont [7/8] 0, 128
        %923 = vxpose.xlu0.c.b16.end [8/8] 0, 128
        %v924 = vpop.trf.xlu0
        %v925 = vpop.trf.xlu0
        %v926 = vpop.trf.xlu0
        %v927 = vpop.trf.xlu0
        %v928 = vpop.trf.xlu0
        %v929 = vpop.trf.xlu0
        %v930 = vpop.trf.xlu0
        %v931 = vpop.trf.xlu0
        %932 = vxpose.xlu0.c.b16.start [1/8] %v878, 128
        %933 = vxpose.xlu0.c.b16.cont [2/8] 0, 128
        %934 = vxpose.xlu0.c.b16.cont [3/8] 0, 128
        %935 = vxpose.xlu0.c.b16.cont [4/8] 0, 128
        %936 = vxpose.xlu0.c.b16.cont [5/8] 0, 128
        %937 = vxpose.xlu0.c.b16.cont [6/8] 0, 128
        %938 = vxpose.xlu0.c.b16.cont [7/8] 0, 128
        %939 = vxpose.xlu0.c.b16.end [8/8] 0, 128
        %v940 = vpop.trf.xlu0
        %v941 = vpop.trf.xlu0
        %v942 = vpop.trf.xlu0
        %v943 = vpop.trf.xlu0
        %v944 = vpop.trf.xlu0
        %v945 = vpop.trf.xlu0
        %v946 = vpop.trf.xlu0
        %v947 = vpop.trf.xlu0
        %948 = vxpose.xlu0.c.b16.start [1/8] %v882, 128
        %949 = vxpose.xlu0.c.b16.cont [2/8] 0, 128
        %950 = vxpose.xlu0.c.b16.cont [3/8] 0, 128
        %951 = vxpose.xlu0.c.b16.cont [4/8] 0, 128
        %952 = vxpose.xlu0.c.b16.cont [5/8] 0, 128
        %953 = vxpose.xlu0.c.b16.cont [6/8] 0, 128
        %954 = vxpose.xlu0.c.b16.cont [7/8] 0, 128
        %955 = vxpose.xlu0.c.b16.end [8/8] 0, 128
        %v956 = vpop.trf.xlu0
        %v957 = vpop.trf.xlu0
        %v958 = vpop.trf.xlu0
        %v959 = vpop.trf.xlu0
        %v960 = vpop.trf.xlu0
        %v961 = vpop.trf.xlu0
        %v962 = vpop.trf.xlu0
        %v963 = vpop.trf.xlu0
        %964 = vxpose.xlu0.c.b16.start [1/8] %v886, 128
        %965 = vxpose.xlu0.c.b16.cont [2/8] 0, 128
        %966 = vxpose.xlu0.c.b16.cont [3/8] 0, 128
        %967 = vxpose.xlu0.c.b16.cont [4/8] 0, 128
        %968 = vxpose.xlu0.c.b16.cont [5/8] 0, 128
        %969 = vxpose.xlu0.c.b16.cont [6/8] 0, 128
        %970 = vxpose.xlu0.c.b16.cont [7/8] 0, 128
        %971 = vxpose.xlu0.c.b16.end [8/8] 0, 128
        %v972 = vpop.trf.xlu0
        %v973 = vpop.trf.xlu0
        %v974 = vpop.trf.xlu0
        %v975 = vpop.trf.xlu0
        %v976 = vpop.trf.xlu0
        %v977 = vpop.trf.xlu0
        %v978 = vpop.trf.xlu0
        %v979 = vpop.trf.xlu0
        %980 = vxpose.xlu0.c.b16.start [1/8] %v890, 128
        %981 = vxpose.xlu0.c.b16.cont [2/8] 0, 128
        %982 = vxpose.xlu0.c.b16.cont [3/8] 0, 128
        %983 = vxpose.xlu0.c.b16.cont [4/8] 0, 128
        %984 = vxpose.xlu0.c.b16.cont [5/8] 0, 128
        %985 = vxpose.xlu0.c.b16.cont [6/8] 0, 128
        %986 = vxpose.xlu0.c.b16.cont [7/8] 0, 128
        %987 = vxpose.xlu0.c.b16.end [8/8] 0, 128
        %v988 = vpop.trf.xlu0
        %v989 = vpop.trf.xlu0
        %v990 = vpop.trf.xlu0
        %v991 = vpop.trf.xlu0
        %v992 = vpop.trf.xlu0
        %v993 = vpop.trf.xlu0
        %v994 = vpop.trf.xlu0
        %v995 = vpop.trf.xlu0
        %996 = vxpose.xlu0.c.b16.start [1/8] %v894, 128
        %997 = vxpose.xlu0.c.b16.cont [2/8] 0, 128
        %998 = vxpose.xlu0.c.b16.cont [3/8] 0, 128
        %999 = vxpose.xlu0.c.b16.cont [4/8] 0, 128
        %1000 = vxpose.xlu0.c.b16.cont [5/8] 0, 128
        %1001 = vxpose.xlu0.c.b16.cont [6/8] 0, 128
        %1002 = vxpose.xlu0.c.b16.cont [7/8] 0, 128
        %1003 = vxpose.xlu0.c.b16.end [8/8] 0, 128
        %v1004 = vpop.trf.xlu0
        %v1005 = vpop.trf.xlu0
        %v1006 = vpop.trf.xlu0
        %v1007 = vpop.trf.xlu0
        %v1008 = vpop.trf.xlu0
        %v1009 = vpop.trf.xlu0
        %v1010 = vpop.trf.xlu0
        %v1011 = vpop.trf.xlu0
        %1012 = vxpose.xlu0.c.b16.start [1/8] %v898, 128
        %1013 = vxpose.xlu0.c.b16.cont [2/8] 0, 128
        %1014 = vxpose.xlu0.c.b16.cont [3/8] 0, 128
        %1015 = vxpose.xlu0.c.b16.cont [4/8] 0, 128
        %1016 = vxpose.xlu0.c.b16.cont [5/8] 0, 128
        %1017 = vxpose.xlu0.c.b16.cont [6/8] 0, 128
        %1018 = vxpose.xlu0.c.b16.cont [7/8] 0, 128
        %1019 = vxpose.xlu0.c.b16.end [8/8] 0, 128
        %v1020 = vpop.trf.xlu0
        %v1021 = vpop.trf.xlu0
        %v1022 = vpop.trf.xlu0
        %v1023 = vpop.trf.xlu0
        %v1024 = vpop.trf.xlu0
        %v1025 = vpop.trf.xlu0
        %v1026 = vpop.trf.xlu0
        %v1027 = vpop.trf.xlu0
        %v1028 = vcombine.low %v908, %v972
        %v1030 = vunpack.c.l.s4 1983009808
        %v1031 = vunpack.c.0.s8 %v1030
        %v1032 = vlaneseq
        %v1033 = vshrl.u32 %v1032, 7
        %v1034 = vsub.s32 %v1031, %v1033
        %v1035 = vrot.slane %v1028, %v1034
        %v1036 = vcombine.low %v940, %v1004
        %v1038 = vunpack.c.l.s4 1983009808
        %v1039 = vunpack.c.0.s8 %v1038
        %v1040 = vlaneseq
        %v1041 = vshrl.u32 %v1040, 7
        %v1042 = vsub.s32 %v1039, %v1041
        %v1043 = vrot.slane %v1036, %v1042
        %v1044 = vcombine.low %v1035, %v1043
        %v1046 = vunpack.c.l.s4 1934713408
        %v1047 = vunpack.c.0.s8 %v1046
        %v1048 = vlaneseq
        %v1049 = vshrl.u32 %v1048, 7
        %v1050 = vsub.s32 %v1047, %v1049
        %v1051 = vrot.slane %v1044, %v1050
        %v1052 = vcombine.high %v1051, 0
        %v1053 = vcombine.low %v924, %v988
        %v1055 = vunpack.c.l.s4 1983009808
        %v1056 = vunpack.c.0.s8 %v1055
        %v1057 = vlaneseq
        %v1058 = vshrl.u32 %v1057, 7
        %v1059 = vsub.s32 %v1056, %v1058
        %v1060 = vrot.slane %v1053, %v1059
        %v1061 = vcombine.low %v956, %v1020
        %v1063 = vunpack.c.l.s4 1983009808
        %v1064 = vunpack.c.0.s8 %v1063
        %v1065 = vlaneseq
        %v1066 = vshrl.u32 %v1065, 7
        %v1067 = vsub.s32 %v1064, %v1066
        %v1068 = vrot.slane %v1061, %v1067
        %v1069 = vcombine.low %v1060, %v1068
        %v1071 = vunpack.c.l.s4 1934713408
        %v1072 = vunpack.c.0.s8 %v1071
        %v1073 = vlaneseq
        %v1074 = vshrl.u32 %v1073, 7
        %v1075 = vsub.s32 %v1072, %v1074
        %v1076 = vrot.slane %v1069, %v1075
        %v1077 = vcombine.high %v1076, 0
        %v1080 = vpack.i.b16 %v1076, %v1051
        %v1081 = vshrl.u32 %v1051, 16
        %v1082 = vshrl.u32 %v1076, 16
        %v1083 = vpack.i.b16 %v1082, %v1081
        %v1086 = vpack.i.b16 %v1077, %v1052
        %v1087 = vshrl.u32 %v1052, 16
        %v1088 = vshrl.u32 %v1077, 16
        %v1089 = vpack.i.b16 %v1088, %v1087
        %vm1090 = vcmask 64512
        %v1092 = vsel %vm1090, %v488, 0
        %vm1094 = vcmask 1043456
        %v1096 = vsel %vm1094, %v1080, 0
        %1098 = vmatprep.subr.bf16.mxu0 0
        %1099 = vmatpush1.bf16.msra.mxu0 %v1096
        %1100 = vmatprep.subr.bf16.mxu0 0
        %1101 = vmatpush1.bf16.msra.mxu0 0
        %1102 = vmatprep.subr.bf16.mxu0 0
        %1103 = vmatpush1.bf16.msra.mxu0 0
        %1104 = vmatprep.subr.bf16.mxu0 0
        %1105 = vmatpush1.bf16.msra.mxu0 0
        %1106 = vmatprep.subr.bf16.mxu0 0
        %1107 = vmatpush1.bf16.msra.mxu0 0
        %1108 = vmatprep.subr.bf16.mxu0 0
        %1109 = vmatpush1.bf16.msra.mxu0 0
        %1110 = vmatprep.subr.bf16.mxu0 0
        %1111 = vmatpush1.bf16.msra.mxu0 0
        %1112 = vmatprep.subr.bf16.mxu0 0
        %1113 = vmatpush1.bf16.msra.mxu0 0
        %1114 = vmatprep.subr.bf16.mxu0 0
        %1115 = vmatpush1.bf16.msra.mxu0 0
        %1116 = vmatprep.subr.bf16.mxu0 0
        %1117 = vmatpush1.bf16.msra.mxu0 0
        %1118 = vmatprep.subr.bf16.mxu0 0
        %1119 = vmatpush1.bf16.msra.mxu0 0
        %1120 = vmatprep.subr.bf16.mxu0 0
        %1121 = vmatpush1.bf16.msra.mxu0 0
        %1122 = vmatprep.subr.bf16.mxu0 0
        %1123 = vmatpush1.bf16.msra.mxu0 0
        %1124 = vmatprep.subr.bf16.mxu0 0
        %1125 = vmatpush1.bf16.msra.mxu0 0
        %1126 = vmatprep.subr.bf16.mxu0 0
        %1127 = vmatpush1.bf16.msra.mxu0 0
        %1128 = vmatprep.subr.bf16.mxu0 0
        %1129 = vmatpush1.bf16.msra.mxu0 0
        %1130 = vmatprep.mubr.bf16.mxu0 0
        %1131 = vmatmul.mubr.bf16.gmra.mrb[0].mxu0 %v1092
        %v1132 = vpop.f32.mrb[0].mxu0
        %v1133 = vadd.f32 0.0, %v1132
        %v1134 = vpop.f32.mrb[0].mxu0
        %v1135 = vpop.f32.mrb[0].mxu0
        %v1136 = vpop.f32.mrb[0].mxu0
        %1137 = vdwg.mxu0
        %v1139 = vsel %vm1090, %v491, 0
        %v1142 = vsel %vm1094, %v1083, 0
        %1144 = vmatprep.subr.bf16.mxu0 0
        %1145 = vmatpush1.bf16.msra.mxu0 %v1142
        %1146 = vmatprep.subr.bf16.mxu0 0
        %1147 = vmatpush1.bf16.msra.mxu0 0
        %1148 = vmatprep.subr.bf16.mxu0 0
        %1149 = vmatpush1.bf16.msra.mxu0 0
        %1150 = vmatprep.subr.bf16.mxu0 0
        %1151 = vmatpush1.bf16.msra.mxu0 0
        %1152 = vmatprep.subr.bf16.mxu0 0
        %1153 = vmatpush1.bf16.msra.mxu0 0
        %1154 = vmatprep.subr.bf16.mxu0 0
        %1155 = vmatpush1.bf16.msra.mxu0 0
        %1156 = vmatprep.subr.bf16.mxu0 0
        %1157 = vmatpush1.bf16.msra.mxu0 0
        %1158 = vmatprep.subr.bf16.mxu0 0
        %1159 = vmatpush1.bf16.msra.mxu0 0
        %1160 = vmatprep.subr.bf16.mxu0 0
        %1161 = vmatpush1.bf16.msra.mxu0 0
        %1162 = vmatprep.subr.bf16.mxu0 0
        %1163 = vmatpush1.bf16.msra.mxu0 0
        %1164 = vmatprep.subr.bf16.mxu0 0
        %1165 = vmatpush1.bf16.msra.mxu0 0
        %1166 = vmatprep.subr.bf16.mxu0 0
        %1167 = vmatpush1.bf16.msra.mxu0 0
        %1168 = vmatprep.subr.bf16.mxu0 0
        %1169 = vmatpush1.bf16.msra.mxu0 0
        %1170 = vmatprep.subr.bf16.mxu0 0
        %1171 = vmatpush1.bf16.msra.mxu0 0
        %1172 = vmatprep.subr.bf16.mxu0 0
        %1173 = vmatpush1.bf16.msra.mxu0 0
        %1174 = vmatprep.subr.bf16.mxu0 0
        %1175 = vmatpush1.bf16.msra.mxu0 0
        %1176 = vmatprep.mubr.bf16.mxu0 0
        %1177 = vmatmul.mubr.bf16.gmra.mrb[0].mxu0 %v1139
        %v1178 = vpop.f32.mrb[0].mxu0
        %v1179 = vadd.f32 0.0, %v1178
        %v1180 = vpop.f32.mrb[0].mxu0
        %v1181 = vpop.f32.mrb[0].mxu0
        %v1182 = vpop.f32.mrb[0].mxu0
        %1183 = vdwg.mxu0
        %v1185 = vsel %vm1090, %v493, 0
        %v1188 = vsel %vm1094, %v1086, 0
        %1190 = vmatprep.subr.bf16.mxu0 0
        %1191 = vmatpush1.bf16.msra.mxu0 %v1188
        %1192 = vmatprep.subr.bf16.mxu0 0
        %1193 = vmatpush1.bf16.msra.mxu0 0
        %1194 = vmatprep.subr.bf16.mxu0 0
        %1195 = vmatpush1.bf16.msra.mxu0 0
        %1196 = vmatprep.subr.bf16.mxu0 0
        %1197 = vmatpush1.bf16.msra.mxu0 0
        %1198 = vmatprep.subr.bf16.mxu0 0
        %1199 = vmatpush1.bf16.msra.mxu0 0
        %1200 = vmatprep.subr.bf16.mxu0 0
        %1201 = vmatpush1.bf16.msra.mxu0 0
        %1202 = vmatprep.subr.bf16.mxu0 0
        %1203 = vmatpush1.bf16.msra.mxu0 0
        %1204 = vmatprep.subr.bf16.mxu0 0
        %1205 = vmatpush1.bf16.msra.mxu0 0
        %1206 = vmatprep.subr.bf16.mxu0 0
        %1207 = vmatpush1.bf16.msra.mxu0 0
        %1208 = vmatprep.subr.bf16.mxu0 0
        %1209 = vmatpush1.bf16.msra.mxu0 0
        %1210 = vmatprep.subr.bf16.mxu0 0
        %1211 = vmatpush1.bf16.msra.mxu0 0
        %1212 = vmatprep.subr.bf16.mxu0 0
        %1213 = vmatpush1.bf16.msra.mxu0 0
        %1214 = vmatprep.subr.bf16.mxu0 0
        %1215 = vmatpush1.bf16.msra.mxu0 0
        %1216 = vmatprep.subr.bf16.mxu0 0
        %1217 = vmatpush1.bf16.msra.mxu0 0
        %1218 = vmatprep.subr.bf16.mxu0 0
        %1219 = vmatpush1.bf16.msra.mxu0 0
        %1220 = vmatprep.subr.bf16.mxu0 0
        %1221 = vmatpush1.bf16.msra.mxu0 0
        %1222 = vmatprep.mubr.bf16.mxu0 0
        %1223 = vmatmul.mubr.bf16.gmra.mrb[0].mxu0 %v1185
        %v1224 = vpop.f32.mrb[0].mxu0
        %v1225 = vadd.f32 0.0, %v1224
        %v1226 = vpop.f32.mrb[0].mxu0
        %v1227 = vpop.f32.mrb[0].mxu0
        %v1228 = vpop.f32.mrb[0].mxu0
        %1229 = vdwg.mxu0
        %v1231 = vsel %vm1090, %v495, 0
        %v1234 = vsel %vm1094, %v1089, 0
        %1236 = vmatprep.subr.bf16.mxu0 0
        %1237 = vmatpush1.bf16.msra.mxu0 %v1234
        %1238 = vmatprep.subr.bf16.mxu0 0
        %1239 = vmatpush1.bf16.msra.mxu0 0
        %1240 = vmatprep.subr.bf16.mxu0 0
        %1241 = vmatpush1.bf16.msra.mxu0 0
        %1242 = vmatprep.subr.bf16.mxu0 0
        %1243 = vmatpush1.bf16.msra.mxu0 0
        %1244 = vmatprep.subr.bf16.mxu0 0
        %1245 = vmatpush1.bf16.msra.mxu0 0
        %1246 = vmatprep.subr.bf16.mxu0 0
        %1247 = vmatpush1.bf16.msra.mxu0 0
        %1248 = vmatprep.subr.bf16.mxu0 0
        %1249 = vmatpush1.bf16.msra.mxu0 0
        %1250 = vmatprep.subr.bf16.mxu0 0
        %1251 = vmatpush1.bf16.msra.mxu0 0
        %1252 = vmatprep.subr.bf16.mxu0 0
        %1253 = vmatpush1.bf16.msra.mxu0 0
        %1254 = vmatprep.subr.bf16.mxu0 0
        %1255 = vmatpush1.bf16.msra.mxu0 0
        %1256 = vmatprep.subr.bf16.mxu0 0
        %1257 = vmatpush1.bf16.msra.mxu0 0
        %1258 = vmatprep.subr.bf16.mxu0 0
        %1259 = vmatpush1.bf16.msra.mxu0 0
        %1260 = vmatprep.subr.bf16.mxu0 0
        %1261 = vmatpush1.bf16.msra.mxu0 0
        %1262 = vmatprep.subr.bf16.mxu0 0
        %1263 = vmatpush1.bf16.msra.mxu0 0
        %1264 = vmatprep.subr.bf16.mxu0 0
        %1265 = vmatpush1.bf16.msra.mxu0 0
        %1266 = vmatprep.subr.bf16.mxu0 0
        %1267 = vmatpush1.bf16.msra.mxu0 0
        %1268 = vmatprep.mubr.bf16.mxu0 0
        %1269 = vmatmul.mubr.bf16.gmra.mrb[0].mxu0 %v1231
        %v1270 = vpop.f32.mrb[0].mxu0
        %v1271 = vadd.f32 0.0, %v1270
        %v1272 = vpop.f32.mrb[0].mxu0
        %v1273 = vpop.f32.mrb[0].mxu0
        %v1274 = vpop.f32.mrb[0].mxu0
        %1275 = vdwg.mxu0
        %v1276 = vsel %vm1090, %v1133, -inf
        %v1277 = vsel %vm1090, %v1179, -inf
        %v1278 = vsel %vm1090, %v1225, -inf
        %v1279 = vsel %vm1090, %v1271, -inf
        %v1280 = vmax.f32 %v1276, %v1277
        %v1281 = vmax.f32 %v1278, %v1279
        %v1282 = vmax.f32 %v1280, %v1281
        %v1283 = vsub.f32 %v1133, %v1282
        %v1284 = vsub.f32 %v1179, %v1282
        %v1285 = vsub.f32 %v1225, %v1282
        %v1286 = vsub.f32 %v1271, %v1282
        %v1287 = vmul.f32 %v1283, 1.442695
        %v1288 = vpow.pop %v1287
        %v1289 = vmul.f32 %v1284, 1.442695
        %v1290 = vpow.pop %v1289
        %v1291 = vmul.f32 %v1285, 1.442695
        %v1292 = vpow.pop %v1291
        %v1293 = vmul.f32 %v1286, 1.442695
        %v1294 = vpow.pop %v1293
        %v1295 = vsel %vm1090, %v1288, 0.0
        %v1296 = vsel %vm1090, %v1290, 0.0
        %v1297 = vadd.f32 %v1295, %v1296
        %v1298 = vsel %vm1090, %v1292, 0.0
        %v1299 = vadd.f32 %v1297, %v1298
        %v1300 = vsel %vm1090, %v1294, 0.0
        %v1301 = vadd.f32 %v1299, %v1300
        %v1302 = vrcp.pop %v1301
        %v1303 = vmul.f32 %v1288, %v1302
        %v1304 = vmul.f32 %v1290, %v1302
        %v1305 = vmul.f32 %v1292, %v1302
        %v1306 = vmul.f32 %v1294, %v1302
        %v1307 = vpack.c.bf16 %v1303, %v1303
        %v1308 = vpack.c.bf16 %v1304, %v1304
        %v1309 = vpack.c.bf16 %v1305, %v1305
        %v1310 = vpack.c.bf16 %v1306, %v1306
        %1311 = vxpose.xlu0.c.b16.start [1/8] %v628, 128
        %1312 = vxpose.xlu0.c.b16.cont [2/8] 0, 128
        %1313 = vxpose.xlu0.c.b16.cont [3/8] 0, 128
        %1314 = vxpose.xlu0.c.b16.cont [4/8] 0, 128
        %1315 = vxpose.xlu0.c.b16.cont [5/8] 0, 128
        %1316 = vxpose.xlu0.c.b16.cont [6/8] 0, 128
        %1317 = vxpose.xlu0.c.b16.cont [7/8] 0, 128
        %1318 = vxpose.xlu0.c.b16.end [8/8] 0, 128
        %v1319 = vpop.trf.xlu0
        %v1320 = vpop.trf.xlu0
        %v1321 = vpop.trf.xlu0
        %v1322 = vpop.trf.xlu0
        %v1323 = vpop.trf.xlu0
        %v1324 = vpop.trf.xlu0
        %v1325 = vpop.trf.xlu0
        %v1326 = vpop.trf.xlu0
        %1327 = vxpose.xlu0.c.b16.start [1/8] %v662, 128
        %1328 = vxpose.xlu0.c.b16.cont [2/8] 0, 128
        %1329 = vxpose.xlu0.c.b16.cont [3/8] 0, 128
        %1330 = vxpose.xlu0.c.b16.cont [4/8] 0, 128
        %1331 = vxpose.xlu0.c.b16.cont [5/8] 0, 128
        %1332 = vxpose.xlu0.c.b16.cont [6/8] 0, 128
        %1333 = vxpose.xlu0.c.b16.cont [7/8] 0, 128
        %1334 = vxpose.xlu0.c.b16.end [8/8] 0, 128
        %v1335 = vpop.trf.xlu0
        %v1336 = vpop.trf.xlu0
        %v1337 = vpop.trf.xlu0
        %v1338 = vpop.trf.xlu0
        %v1339 = vpop.trf.xlu0
        %v1340 = vpop.trf.xlu0
        %v1341 = vpop.trf.xlu0
        %v1342 = vpop.trf.xlu0
        %1343 = vxpose.xlu0.c.b16.start [1/8] %v636, 128
        %1344 = vxpose.xlu0.c.b16.cont [2/8] 0, 128
        %1345 = vxpose.xlu0.c.b16.cont [3/8] 0, 128
        %1346 = vxpose.xlu0.c.b16.cont [4/8] 0, 128
        %1347 = vxpose.xlu0.c.b16.cont [5/8] 0, 128
        %1348 = vxpose.xlu0.c.b16.cont [6/8] 0, 128
        %1349 = vxpose.xlu0.c.b16.cont [7/8] 0, 128
        %1350 = vxpose.xlu0.c.b16.end [8/8] 0, 128
        %v1351 = vpop.trf.xlu0
        %v1352 = vpop.trf.xlu0
        %v1353 = vpop.trf.xlu0
        %v1354 = vpop.trf.xlu0
        %v1355 = vpop.trf.xlu0
        %v1356 = vpop.trf.xlu0
        %v1357 = vpop.trf.xlu0
        %v1358 = vpop.trf.xlu0
        %1359 = vxpose.xlu0.c.b16.start [1/8] %v670, 128
        %1360 = vxpose.xlu0.c.b16.cont [2/8] 0, 128
        %1361 = vxpose.xlu0.c.b16.cont [3/8] 0, 128
        %1362 = vxpose.xlu0.c.b16.cont [4/8] 0, 128
        %1363 = vxpose.xlu0.c.b16.cont [5/8] 0, 128
        %1364 = vxpose.xlu0.c.b16.cont [6/8] 0, 128
        %1365 = vxpose.xlu0.c.b16.cont [7/8] 0, 128
        %1366 = vxpose.xlu0.c.b16.end [8/8] 0, 128
        %v1367 = vpop.trf.xlu0
        %v1368 = vpop.trf.xlu0
        %v1369 = vpop.trf.xlu0
        %v1370 = vpop.trf.xlu0
        %v1371 = vpop.trf.xlu0
        %v1372 = vpop.trf.xlu0
        %v1373 = vpop.trf.xlu0
        %v1374 = vpop.trf.xlu0
        %1375 = vxpose.xlu0.c.b16.start [1/8] %v635, 128
        %1376 = vxpose.xlu0.c.b16.cont [2/8] 0, 128
        %1377 = vxpose.xlu0.c.b16.cont [3/8] 0, 128
        %1378 = vxpose.xlu0.c.b16.cont [4/8] 0, 128
        %1379 = vxpose.xlu0.c.b16.cont [5/8] 0, 128
        %1380 = vxpose.xlu0.c.b16.cont [6/8] 0, 128
        %1381 = vxpose.xlu0.c.b16.cont [7/8] 0, 128
        %1382 = vxpose.xlu0.c.b16.end [8/8] 0, 128
        %v1383 = vpop.trf.xlu0
        %v1384 = vpop.trf.xlu0
        %v1385 = vpop.trf.xlu0
        %v1386 = vpop.trf.xlu0
        %v1387 = vpop.trf.xlu0
        %v1388 = vpop.trf.xlu0
        %v1389 = vpop.trf.xlu0
        %v1390 = vpop.trf.xlu0
        %1391 = vxpose.xlu0.c.b16.start [1/8] %v669, 128
        %1392 = vxpose.xlu0.c.b16.cont [2/8] 0, 128
        %1393 = vxpose.xlu0.c.b16.cont [3/8] 0, 128
        %1394 = vxpose.xlu0.c.b16.cont [4/8] 0, 128
        %1395 = vxpose.xlu0.c.b16.cont [5/8] 0, 128
        %1396 = vxpose.xlu0.c.b16.cont [6/8] 0, 128
        %1397 = vxpose.xlu0.c.b16.cont [7/8] 0, 128
        %1398 = vxpose.xlu0.c.b16.end [8/8] 0, 128
        %v1399 = vpop.trf.xlu0
        %v1400 = vpop.trf.xlu0
        %v1401 = vpop.trf.xlu0
        %v1402 = vpop.trf.xlu0
        %v1403 = vpop.trf.xlu0
        %v1404 = vpop.trf.xlu0
        %v1405 = vpop.trf.xlu0
        %v1406 = vpop.trf.xlu0
        %1407 = vxpose.xlu0.c.b16.start [1/8] %v637, 128
        %1408 = vxpose.xlu0.c.b16.cont [2/8] 0, 128
        %1409 = vxpose.xlu0.c.b16.cont [3/8] 0, 128
        %1410 = vxpose.xlu0.c.b16.cont [4/8] 0, 128
        %1411 = vxpose.xlu0.c.b16.cont [5/8] 0, 128
        %1412 = vxpose.xlu0.c.b16.cont [6/8] 0, 128
        %1413 = vxpose.xlu0.c.b16.cont [7/8] 0, 128
        %1414 = vxpose.xlu0.c.b16.end [8/8] 0, 128
        %v1415 = vpop.trf.xlu0
        %v1416 = vpop.trf.xlu0
        %v1417 = vpop.trf.xlu0
        %v1418 = vpop.trf.xlu0
        %v1419 = vpop.trf.xlu0
        %v1420 = vpop.trf.xlu0
        %v1421 = vpop.trf.xlu0
        %v1422 = vpop.trf.xlu0
        %1423 = vxpose.xlu0.c.b16.start [1/8] %v671, 128
        %1424 = vxpose.xlu0.c.b16.cont [2/8] 0, 128
        %1425 = vxpose.xlu0.c.b16.cont [3/8] 0, 128
        %1426 = vxpose.xlu0.c.b16.cont [4/8] 0, 128
        %1427 = vxpose.xlu0.c.b16.cont [5/8] 0, 128
        %1428 = vxpose.xlu0.c.b16.cont [6/8] 0, 128
        %1429 = vxpose.xlu0.c.b16.cont [7/8] 0, 128
        %1430 = vxpose.xlu0.c.b16.end [8/8] 0, 128
        %v1431 = vpop.trf.xlu0
        %v1432 = vpop.trf.xlu0
        %v1433 = vpop.trf.xlu0
        %v1434 = vpop.trf.xlu0
        %v1435 = vpop.trf.xlu0
        %v1436 = vpop.trf.xlu0
        %v1437 = vpop.trf.xlu0
        %v1438 = vpop.trf.xlu0
        %v1439 = vcombine.low %v1319, %v1383
        %v1441 = vunpack.c.l.s4 1983009808
        %v1442 = vunpack.c.0.s8 %v1441
        %v1443 = vlaneseq
        %v1444 = vshrl.u32 %v1443, 7
        %v1445 = vsub.s32 %v1442, %v1444
        %v1446 = vrot.slane %v1439, %v1445
        %v1447 = vcombine.low %v1351, %v1415
        %v1449 = vunpack.c.l.s4 1983009808
        %v1450 = vunpack.c.0.s8 %v1449
        %v1451 = vlaneseq
        %v1452 = vshrl.u32 %v1451, 7
        %v1453 = vsub.s32 %v1450, %v1452
        %v1454 = vrot.slane %v1447, %v1453
        %v1455 = vcombine.low %v1446, %v1454
        %v1456 = vcombine.high %v1446, %v1454
        %v1458 = vunpack.c.l.s4 1934713408
        %v1459 = vunpack.c.0.s8 %v1458
        %v1460 = vlaneseq
        %v1461 = vshrl.u32 %v1460, 7
        %v1462 = vsub.s32 %v1459, %v1461
        %v1463 = vrot.slane %v1455, %v1462
        %v1465 = vunpack.c.l.s4 1934713408
        %v1466 = vunpack.c.0.s8 %v1465
        %v1467 = vlaneseq
        %v1468 = vshrl.u32 %v1467, 7
        %v1469 = vsub.s32 %v1466, %v1468
        %v1470 = vrot.slane %v1456, %v1469
        %v1471 = vcombine.high %v1463, 0
        %v1472 = vcombine.high %v1470, 0
        %v1473 = vcombine.low %v1335, %v1399
        %v1475 = vunpack.c.l.s4 1983009808
        %v1476 = vunpack.c.0.s8 %v1475
        %v1477 = vlaneseq
        %v1478 = vshrl.u32 %v1477, 7
        %v1479 = vsub.s32 %v1476, %v1478
        %v1480 = vrot.slane %v1473, %v1479
        %v1481 = vcombine.low %v1367, %v1431
        %v1483 = vunpack.c.l.s4 1983009808
        %v1484 = vunpack.c.0.s8 %v1483
        %v1485 = vlaneseq
        %v1486 = vshrl.u32 %v1485, 7
        %v1487 = vsub.s32 %v1484, %v1486
        %v1488 = vrot.slane %v1481, %v1487
        %v1489 = vcombine.low %v1480, %v1488
        %v1490 = vcombine.high %v1480, %v1488
        %v1492 = vunpack.c.l.s4 1934713408
        %v1493 = vunpack.c.0.s8 %v1492
        %v1494 = vlaneseq
        %v1495 = vshrl.u32 %v1494, 7
        %v1496 = vsub.s32 %v1493, %v1495
        %v1497 = vrot.slane %v1489, %v1496
        %v1499 = vunpack.c.l.s4 1934713408
        %v1500 = vunpack.c.0.s8 %v1499
        %v1501 = vlaneseq
        %v1502 = vshrl.u32 %v1501, 7
        %v1503 = vsub.s32 %v1500, %v1502
        %v1504 = vrot.slane %v1490, %v1503
        %v1505 = vcombine.high %v1497, 0
        %v1506 = vcombine.high %v1504, 0
        %v1509 = vpack.i.b16 %v1497, %v1463
        %v1511 = vshrl.u32 %v1463, 16
        %v1512 = vshrl.u32 %v1497, 16
        %v1513 = vpack.i.b16 %v1512, %v1511
        %v1517 = vpack.i.b16 %v1505, %v1471
        %v1519 = vshrl.u32 %v1471, 16
        %v1520 = vshrl.u32 %v1505, 16
        %v1521 = vpack.i.b16 %v1520, %v1519
        %v1525 = vpack.i.b16 %v1504, %v1470
        %v1527 = vshrl.u32 %v1470, 16
        %v1528 = vshrl.u32 %v1504, 16
        %v1529 = vpack.i.b16 %v1528, %v1527
        %v1533 = vpack.i.b16 %v1506, %v1472
        %v1535 = vshrl.u32 %v1472, 16
        %v1536 = vshrl.u32 %v1506, 16
        %v1537 = vpack.i.b16 %v1536, %v1535
        %1539 = vxpose.xlu0.c.b16.start [1/8] %v1509, 128
        %1540 = vxpose.xlu0.c.b16.cont [2/8] 0, 128
        %1541 = vxpose.xlu0.c.b16.cont [3/8] 0, 128
        %1542 = vxpose.xlu0.c.b16.cont [4/8] 0, 128
        %1543 = vxpose.xlu0.c.b16.cont [5/8] 0, 128
        %1544 = vxpose.xlu0.c.b16.cont [6/8] 0, 128
        %1545 = vxpose.xlu0.c.b16.cont [7/8] 0, 128
        %1546 = vxpose.xlu0.c.b16.end [8/8] 0, 128
        %v1547 = vpop.trf.xlu0
        %v1548 = vpop.trf.xlu0
        %v1549 = vpop.trf.xlu0
        %v1550 = vpop.trf.xlu0
        %v1551 = vpop.trf.xlu0
        %v1552 = vpop.trf.xlu0
        %v1553 = vpop.trf.xlu0
        %v1554 = vpop.trf.xlu0
        %1555 = vxpose.xlu0.c.b16.start [1/8] %v1513, 128
        %1556 = vxpose.xlu0.c.b16.cont [2/8] 0, 128
        %1557 = vxpose.xlu0.c.b16.cont [3/8] 0, 128
        %1558 = vxpose.xlu0.c.b16.cont [4/8] 0, 128
        %1559 = vxpose.xlu0.c.b16.cont [5/8] 0, 128
        %1560 = vxpose.xlu0.c.b16.cont [6/8] 0, 128
        %1561 = vxpose.xlu0.c.b16.cont [7/8] 0, 128
        %1562 = vxpose.xlu0.c.b16.end [8/8] 0, 128
        %v1563 = vpop.trf.xlu0
        %v1564 = vpop.trf.xlu0
        %v1565 = vpop.trf.xlu0
        %v1566 = vpop.trf.xlu0
        %v1567 = vpop.trf.xlu0
        %v1568 = vpop.trf.xlu0
        %v1569 = vpop.trf.xlu0
        %v1570 = vpop.trf.xlu0
        %1571 = vxpose.xlu0.c.b16.start [1/8] %v1517, 128
        %1572 = vxpose.xlu0.c.b16.cont [2/8] 0, 128
        %1573 = vxpose.xlu0.c.b16.cont [3/8] 0, 128
        %1574 = vxpose.xlu0.c.b16.cont [4/8] 0, 128
        %1575 = vxpose.xlu0.c.b16.cont [5/8] 0, 128
        %1576 = vxpose.xlu0.c.b16.cont [6/8] 0, 128
        %1577 = vxpose.xlu0.c.b16.cont [7/8] 0, 128
        %1578 = vxpose.xlu0.c.b16.end [8/8] 0, 128
        %v1579 = vpop.trf.xlu0
        %v1580 = vpop.trf.xlu0
        %v1581 = vpop.trf.xlu0
        %v1582 = vpop.trf.xlu0
        %v1583 = vpop.trf.xlu0
        %v1584 = vpop.trf.xlu0
        %v1585 = vpop.trf.xlu0
        %v1586 = vpop.trf.xlu0
        %1587 = vxpose.xlu0.c.b16.start [1/8] %v1521, 128
        %1588 = vxpose.xlu0.c.b16.cont [2/8] 0, 128
        %1589 = vxpose.xlu0.c.b16.cont [3/8] 0, 128
        %1590 = vxpose.xlu0.c.b16.cont [4/8] 0, 128
        %1591 = vxpose.xlu0.c.b16.cont [5/8] 0, 128
        %1592 = vxpose.xlu0.c.b16.cont [6/8] 0, 128
        %1593 = vxpose.xlu0.c.b16.cont [7/8] 0, 128
        %1594 = vxpose.xlu0.c.b16.end [8/8] 0, 128
        %v1595 = vpop.trf.xlu0
        %v1596 = vpop.trf.xlu0
        %v1597 = vpop.trf.xlu0
        %v1598 = vpop.trf.xlu0
        %v1599 = vpop.trf.xlu0
        %v1600 = vpop.trf.xlu0
        %v1601 = vpop.trf.xlu0
        %v1602 = vpop.trf.xlu0
        %1603 = vxpose.xlu0.c.b16.start [1/8] %v1525, 128
        %1604 = vxpose.xlu0.c.b16.cont [2/8] 0, 128
        %1605 = vxpose.xlu0.c.b16.cont [3/8] 0, 128
        %1606 = vxpose.xlu0.c.b16.cont [4/8] 0, 128
        %1607 = vxpose.xlu0.c.b16.cont [5/8] 0, 128
        %1608 = vxpose.xlu0.c.b16.cont [6/8] 0, 128
        %1609 = vxpose.xlu0.c.b16.cont [7/8] 0, 128
        %1610 = vxpose.xlu0.c.b16.end [8/8] 0, 128
        %v1611 = vpop.trf.xlu0
        %v1612 = vpop.trf.xlu0
        %v1613 = vpop.trf.xlu0
        %v1614 = vpop.trf.xlu0
        %v1615 = vpop.trf.xlu0
        %v1616 = vpop.trf.xlu0
        %v1617 = vpop.trf.xlu0
        %v1618 = vpop.trf.xlu0
        %1619 = vxpose.xlu0.c.b16.start [1/8] %v1529, 128
        %1620 = vxpose.xlu0.c.b16.cont [2/8] 0, 128
        %1621 = vxpose.xlu0.c.b16.cont [3/8] 0, 128
        %1622 = vxpose.xlu0.c.b16.cont [4/8] 0, 128
        %1623 = vxpose.xlu0.c.b16.cont [5/8] 0, 128
        %1624 = vxpose.xlu0.c.b16.cont [6/8] 0, 128
        %1625 = vxpose.xlu0.c.b16.cont [7/8] 0, 128
        %1626 = vxpose.xlu0.c.b16.end [8/8] 0, 128
        %v1627 = vpop.trf.xlu0
        %v1628 = vpop.trf.xlu0
        %v1629 = vpop.trf.xlu0
        %v1630 = vpop.trf.xlu0
        %v1631 = vpop.trf.xlu0
        %v1632 = vpop.trf.xlu0
        %v1633 = vpop.trf.xlu0
        %v1634 = vpop.trf.xlu0
        %1635 = vxpose.xlu0.c.b16.start [1/8] %v1533, 128
        %1636 = vxpose.xlu0.c.b16.cont [2/8] 0, 128
        %1637 = vxpose.xlu0.c.b16.cont [3/8] 0, 128
        %1638 = vxpose.xlu0.c.b16.cont [4/8] 0, 128
        %1639 = vxpose.xlu0.c.b16.cont [5/8] 0, 128
        %1640 = vxpose.xlu0.c.b16.cont [6/8] 0, 128
        %1641 = vxpose.xlu0.c.b16.cont [7/8] 0, 128
        %1642 = vxpose.xlu0.c.b16.end [8/8] 0, 128
        %v1643 = vpop.trf.xlu0
        %v1644 = vpop.trf.xlu0
        %v1645 = vpop.trf.xlu0
        %v1646 = vpop.trf.xlu0
        %v1647 = vpop.trf.xlu0
        %v1648 = vpop.trf.xlu0
        %v1649 = vpop.trf.xlu0
        %v1650 = vpop.trf.xlu0
        %1651 = vxpose.xlu0.c.b16.start [1/8] %v1537, 128
        %1652 = vxpose.xlu0.c.b16.cont [2/8] 0, 128
        %1653 = vxpose.xlu0.c.b16.cont [3/8] 0, 128
        %1654 = vxpose.xlu0.c.b16.cont [4/8] 0, 128
        %1655 = vxpose.xlu0.c.b16.cont [5/8] 0, 128
        %1656 = vxpose.xlu0.c.b16.cont [6/8] 0, 128
        %1657 = vxpose.xlu0.c.b16.cont [7/8] 0, 128
        %1658 = vxpose.xlu0.c.b16.end [8/8] 0, 128
        %v1659 = vpop.trf.xlu0
        %v1660 = vpop.trf.xlu0
        %v1661 = vpop.trf.xlu0
        %v1662 = vpop.trf.xlu0
        %v1663 = vpop.trf.xlu0
        %v1664 = vpop.trf.xlu0
        %v1665 = vpop.trf.xlu0
        %v1666 = vpop.trf.xlu0
        %v1667 = vcombine.low %v1547, %v1611
        %v1669 = vunpack.c.l.s4 1983009808
        %v1670 = vunpack.c.0.s8 %v1669
        %v1671 = vlaneseq
        %v1672 = vshrl.u32 %v1671, 7
        %v1673 = vsub.s32 %v1670, %v1672
        %v1674 = vrot.slane %v1667, %v1673
        %v1675 = vcombine.low %v1579, %v1643
        %v1677 = vunpack.c.l.s4 1983009808
        %v1678 = vunpack.c.0.s8 %v1677
        %v1679 = vlaneseq
        %v1680 = vshrl.u32 %v1679, 7
        %v1681 = vsub.s32 %v1678, %v1680
        %v1682 = vrot.slane %v1675, %v1681
        %v1683 = vcombine.low %v1674, %v1682
        %v1685 = vunpack.c.l.s4 1934713408
        %v1686 = vunpack.c.0.s8 %v1685
        %v1687 = vlaneseq
        %v1688 = vshrl.u32 %v1687, 7
        %v1689 = vsub.s32 %v1686, %v1688
        %v1690 = vrot.slane %v1683, %v1689
        %v1691 = vcombine.high %v1690, 0
        %v1692 = vcombine.low %v1563, %v1627
        %v1694 = vunpack.c.l.s4 1983009808
        %v1695 = vunpack.c.0.s8 %v1694
        %v1696 = vlaneseq
        %v1697 = vshrl.u32 %v1696, 7
        %v1698 = vsub.s32 %v1695, %v1697
        %v1699 = vrot.slane %v1692, %v1698
        %v1700 = vcombine.low %v1595, %v1659
        %v1702 = vunpack.c.l.s4 1983009808
        %v1703 = vunpack.c.0.s8 %v1702
        %v1704 = vlaneseq
        %v1705 = vshrl.u32 %v1704, 7
        %v1706 = vsub.s32 %v1703, %v1705
        %v1707 = vrot.slane %v1700, %v1706
        %v1708 = vcombine.low %v1699, %v1707
        %v1710 = vunpack.c.l.s4 1934713408
        %v1711 = vunpack.c.0.s8 %v1710
        %v1712 = vlaneseq
        %v1713 = vshrl.u32 %v1712, 7
        %v1714 = vsub.s32 %v1711, %v1713
        %v1715 = vrot.slane %v1708, %v1714
        %v1716 = vcombine.high %v1715, 0
        %v1719 = vpack.i.b16 %v1715, %v1690
        %v1720 = vshrl.u32 %v1690, 16
        %v1721 = vshrl.u32 %v1715, 16
        %v1722 = vpack.i.b16 %v1721, %v1720
        %v1725 = vpack.i.b16 %v1716, %v1691
        %v1726 = vshrl.u32 %v1691, 16
        %v1727 = vshrl.u32 %v1716, 16
        %v1728 = vpack.i.b16 %v1727, %v1726
        %v1730 = vsel %vm1090, %v1719, 0
        %v1733 = vsel %vm1090, %v1307, 0
        %1735 = vmatprep.subr.bf16.mxu0 0
        %1736 = vmatpush1.bf16.xpose.msra.mxu0 %v1733
        %1737 = vmatprep.subr.bf16.mxu0 0
        %1738 = vmatpush1.bf16.xpose.msra.mxu0 0
        %1739 = vmatprep.subr.bf16.mxu0 0
        %1740 = vmatpush1.bf16.xpose.msra.mxu0 0
        %1741 = vmatprep.subr.bf16.mxu0 0
        %1742 = vmatpush1.bf16.xpose.msra.mxu0 0
        %1743 = vmatprep.subr.bf16.mxu0 0
        %1744 = vmatpush1.bf16.xpose.msra.mxu0 0
        %1745 = vmatprep.subr.bf16.mxu0 0
        %1746 = vmatpush1.bf16.xpose.msra.mxu0 0
        %1747 = vmatprep.subr.bf16.mxu0 0
        %1748 = vmatpush1.bf16.xpose.msra.mxu0 0
        %1749 = vmatprep.subr.bf16.mxu0 0
        %1750 = vmatpush1.bf16.xpose.msra.mxu0 0
        %1751 = vmatprep.subr.bf16.mxu0 0
        %1752 = vmatpush1.bf16.xpose.msra.mxu0 0
        %1753 = vmatprep.subr.bf16.mxu0 0
        %1754 = vmatpush1.bf16.xpose.msra.mxu0 0
        %1755 = vmatprep.subr.bf16.mxu0 0
        %1756 = vmatpush1.bf16.xpose.msra.mxu0 0
        %1757 = vmatprep.subr.bf16.mxu0 0
        %1758 = vmatpush1.bf16.xpose.msra.mxu0 0
        %1759 = vmatprep.subr.bf16.mxu0 0
        %1760 = vmatpush1.bf16.xpose.msra.mxu0 0
        %1761 = vmatprep.subr.bf16.mxu0 0
        %1762 = vmatpush1.bf16.xpose.msra.mxu0 0
        %1763 = vmatprep.subr.bf16.mxu0 0
        %1764 = vmatpush1.bf16.xpose.msra.mxu0 0
        %1765 = vmatprep.subr.bf16.mxu0 0
        %1766 = vmatpush1.bf16.xpose.msra.mxu0 0
        %1767 = vmatprep.mubr.bf16.mxu0 0
        %1768 = vmatmul.mubr.bf16.gmra.mrb[0].mxu0 %v1730
        %v1769 = vpop.f32.mrb[0].mxu0
        %v1770 = vadd.f32 0.0, %v1769
        %v1771 = vpop.f32.mrb[0].mxu0
        %v1772 = vpop.f32.mrb[0].mxu0
        %v1773 = vpop.f32.mrb[0].mxu0
        %1774 = vdwg.mxu0
        %v1776 = vsel %vm1090, %v1722, 0
        %v1779 = vsel %vm1090, %v1308, 0
        %1781 = vmatprep.subr.bf16.mxu0 0
        %1782 = vmatpush1.bf16.xpose.msra.mxu0 %v1779
        %1783 = vmatprep.subr.bf16.mxu0 0
        %1784 = vmatpush1.bf16.xpose.msra.mxu0 0
        %1785 = vmatprep.subr.bf16.mxu0 0
        %1786 = vmatpush1.bf16.xpose.msra.mxu0 0
        %1787 = vmatprep.subr.bf16.mxu0 0
        %1788 = vmatpush1.bf16.xpose.msra.mxu0 0
        %1789 = vmatprep.subr.bf16.mxu0 0
        %1790 = vmatpush1.bf16.xpose.msra.mxu0 0
        %1791 = vmatprep.subr.bf16.mxu0 0
        %1792 = vmatpush1.bf16.xpose.msra.mxu0 0
        %1793 = vmatprep.subr.bf16.mxu0 0
        %1794 = vmatpush1.bf16.xpose.msra.mxu0 0
        %1795 = vmatprep.subr.bf16.mxu0 0
        %1796 = vmatpush1.bf16.xpose.msra.mxu0 0
        %1797 = vmatprep.subr.bf16.mxu0 0
        %1798 = vmatpush1.bf16.xpose.msra.mxu0 0
        %1799 = vmatprep.subr.bf16.mxu0 0
        %1800 = vmatpush1.bf16.xpose.msra.mxu0 0
        %1801 = vmatprep.subr.bf16.mxu0 0
        %1802 = vmatpush1.bf16.xpose.msra.mxu0 0
        %1803 = vmatprep.subr.bf16.mxu0 0
        %1804 = vmatpush1.bf16.xpose.msra.mxu0 0
        %1805 = vmatprep.subr.bf16.mxu0 0
        %1806 = vmatpush1.bf16.xpose.msra.mxu0 0
        %1807 = vmatprep.subr.bf16.mxu0 0
        %1808 = vmatpush1.bf16.xpose.msra.mxu0 0
        %1809 = vmatprep.subr.bf16.mxu0 0
        %1810 = vmatpush1.bf16.xpose.msra.mxu0 0
        %1811 = vmatprep.subr.bf16.mxu0 0
        %1812 = vmatpush1.bf16.xpose.msra.mxu0 0
        %1813 = vmatprep.mubr.bf16.mxu0 0
        %1814 = vmatmul.mubr.bf16.gmra.mrb[0].mxu0 %v1776
        %v1815 = vpop.f32.mrb[0].mxu0
        %v1816 = vadd.f32 0.0, %v1815
        %v1817 = vpop.f32.mrb[0].mxu0
        %v1818 = vpop.f32.mrb[0].mxu0
        %v1819 = vpop.f32.mrb[0].mxu0
        %1820 = vdwg.mxu0
        %v1822 = vsel %vm1090, %v1725, 0
        %v1825 = vsel %vm1090, %v1309, 0
        %1827 = vmatprep.subr.bf16.mxu0 0
        %1828 = vmatpush1.bf16.xpose.msra.mxu0 %v1825
        %1829 = vmatprep.subr.bf16.mxu0 0
        %1830 = vmatpush1.bf16.xpose.msra.mxu0 0
        %1831 = vmatprep.subr.bf16.mxu0 0
        %1832 = vmatpush1.bf16.xpose.msra.mxu0 0
        %1833 = vmatprep.subr.bf16.mxu0 0
        %1834 = vmatpush1.bf16.xpose.msra.mxu0 0
        %1835 = vmatprep.subr.bf16.mxu0 0
        %1836 = vmatpush1.bf16.xpose.msra.mxu0 0
        %1837 = vmatprep.subr.bf16.mxu0 0
        %1838 = vmatpush1.bf16.xpose.msra.mxu0 0
        %1839 = vmatprep.subr.bf16.mxu0 0
        %1840 = vmatpush1.bf16.xpose.msra.mxu0 0
        %1841 = vmatprep.subr.bf16.mxu0 0
        %1842 = vmatpush1.bf16.xpose.msra.mxu0 0
        %1843 = vmatprep.subr.bf16.mxu0 0
        %1844 = vmatpush1.bf16.xpose.msra.mxu0 0
        %1845 = vmatprep.subr.bf16.mxu0 0
        %1846 = vmatpush1.bf16.xpose.msra.mxu0 0
        %1847 = vmatprep.subr.bf16.mxu0 0
        %1848 = vmatpush1.bf16.xpose.msra.mxu0 0
        %1849 = vmatprep.subr.bf16.mxu0 0
        %1850 = vmatpush1.bf16.xpose.msra.mxu0 0
        %1851 = vmatprep.subr.bf16.mxu0 0
        %1852 = vmatpush1.bf16.xpose.msra.mxu0 0
        %1853 = vmatprep.subr.bf16.mxu0 0
        %1854 = vmatpush1.bf16.xpose.msra.mxu0 0
        %1855 = vmatprep.subr.bf16.mxu0 0
        %1856 = vmatpush1.bf16.xpose.msra.mxu0 0
        %1857 = vmatprep.subr.bf16.mxu0 0
        %1858 = vmatpush1.bf16.xpose.msra.mxu0 0
        %1859 = vmatprep.mubr.bf16.mxu0 0
        %1860 = vmatmul.mubr.bf16.gmra.mrb[0].mxu0 %v1822
        %v1861 = vpop.f32.mrb[0].mxu0
        %v1862 = vadd.f32 0.0, %v1861
        %v1863 = vpop.f32.mrb[0].mxu0
        %v1864 = vpop.f32.mrb[0].mxu0
        %v1865 = vpop.f32.mrb[0].mxu0
        %1866 = vdwg.mxu0
        %v1868 = vsel %vm1090, %v1728, 0
        %v1871 = vsel %vm1090, %v1310, 0
        %1873 = vmatprep.subr.bf16.mxu0 0
        %1874 = vmatpush1.bf16.xpose.msra.mxu0 %v1871
        %1875 = vmatprep.subr.bf16.mxu0 0
        %1876 = vmatpush1.bf16.xpose.msra.mxu0 0
        %1877 = vmatprep.subr.bf16.mxu0 0
        %1878 = vmatpush1.bf16.xpose.msra.mxu0 0
        %1879 = vmatprep.subr.bf16.mxu0 0
        %1880 = vmatpush1.bf16.xpose.msra.mxu0 0
        %1881 = vmatprep.subr.bf16.mxu0 0
        %1882 = vmatpush1.bf16.xpose.msra.mxu0 0
        %1883 = vmatprep.subr.bf16.mxu0 0
        %1884 = vmatpush1.bf16.xpose.msra.mxu0 0
        %1885 = vmatprep.subr.bf16.mxu0 0
        %1886 = vmatpush1.bf16.xpose.msra.mxu0 0
        %1887 = vmatprep.subr.bf16.mxu0 0
        %1888 = vmatpush1.bf16.xpose.msra.mxu0 0
        %1889 = vmatprep.subr.bf16.mxu0 0
        %1890 = vmatpush1.bf16.xpose.msra.mxu0 0
        %1891 = vmatprep.subr.bf16.mxu0 0
        %1892 = vmatpush1.bf16.xpose.msra.mxu0 0
        %1893 = vmatprep.subr.bf16.mxu0 0
        %1894 = vmatpush1.bf16.xpose.msra.mxu0 0
        %1895 = vmatprep.subr.bf16.mxu0 0
        %1896 = vmatpush1.bf16.xpose.msra.mxu0 0
        %1897 = vmatprep.subr.bf16.mxu0 0
        %1898 = vmatpush1.bf16.xpose.msra.mxu0 0
        %1899 = vmatprep.subr.bf16.mxu0 0
        %1900 = vmatpush1.bf16.xpose.msra.mxu0 0
        %1901 = vmatprep.subr.bf16.mxu0 0
        %1902 = vmatpush1.bf16.xpose.msra.mxu0 0
        %1903 = vmatprep.subr.bf16.mxu0 0
        %1904 = vmatpush1.bf16.xpose.msra.mxu0 0
        %1905 = vmatprep.mubr.bf16.mxu0 0
        %1906 = vmatmul.mubr.bf16.gmra.mrb[0].mxu0 %v1868
        %v1907 = vpop.f32.mrb[0].mxu0
        %v1908 = vadd.f32 0.0, %v1907
        %v1909 = vpop.f32.mrb[0].mxu0
        %v1910 = vpop.f32.mrb[0].mxu0
        %v1911 = vpop.f32.mrb[0].mxu0
        %1912 = vdwg.mxu0
        %1913 = vxpose.xlu0.b32.start [1/16] %v1770, 128
        %1914 = vxpose.xlu0.b32.cont [2/16] 0.0, 128
        %1915 = vxpose.xlu0.b32.cont [3/16] 0.0, 128
        %1916 = vxpose.xlu0.b32.cont [4/16] 0.0, 128
        %1917 = vxpose.xlu0.b32.cont [5/16] 0.0, 128
        %1918 = vxpose.xlu0.b32.cont [6/16] 0.0, 128
        %1919 = vxpose.xlu0.b32.cont [7/16] 0.0, 128
        %1920 = vxpose.xlu0.b32.cont [8/16] 0.0, 128
        %1921 = vxpose.xlu0.b32.cont [9/16] 0.0, 128
        %1922 = vxpose.xlu0.b32.cont [10/16] 0.0, 128
        %1923 = vxpose.xlu0.b32.cont [11/16] 0.0, 128
        %1924 = vxpose.xlu0.b32.cont [12/16] 0.0, 128
        %1925 = vxpose.xlu0.b32.cont [13/16] 0.0, 128
        %1926 = vxpose.xlu0.b32.cont [14/16] 0.0, 128
        %1927 = vxpose.xlu0.b32.cont [15/16] 0.0, 128
        %1928 = vxpose.xlu0.b32.end [16/16] 0.0, 128
        %v1929 = vpop.trf.xlu0
        %v1930 = vpop.trf.xlu0
        %v1931 = vpop.trf.xlu0
        %v1932 = vpop.trf.xlu0
        %v1933 = vpop.trf.xlu0
        %v1934 = vpop.trf.xlu0
        %v1935 = vpop.trf.xlu0
        %v1936 = vpop.trf.xlu0
        %v1937 = vpop.trf.xlu0
        %v1938 = vpop.trf.xlu0
        %v1939 = vpop.trf.xlu0
        %v1940 = vpop.trf.xlu0
        %v1941 = vpop.trf.xlu0
        %v1942 = vpop.trf.xlu0
        %v1943 = vpop.trf.xlu0
        %v1944 = vpop.trf.xlu0
        %1945 = vxpose.xlu0.b32.start [1/16] %v1816, 128
        %1946 = vxpose.xlu0.b32.cont [2/16] 0.0, 128
        %1947 = vxpose.xlu0.b32.cont [3/16] 0.0, 128
        %1948 = vxpose.xlu0.b32.cont [4/16] 0.0, 128
        %1949 = vxpose.xlu0.b32.cont [5/16] 0.0, 128
        %1950 = vxpose.xlu0.b32.cont [6/16] 0.0, 128
        %1951 = vxpose.xlu0.b32.cont [7/16] 0.0, 128
        %1952 = vxpose.xlu0.b32.cont [8/16] 0.0, 128
        %1953 = vxpose.xlu0.b32.cont [9/16] 0.0, 128
        %1954 = vxpose.xlu0.b32.cont [10/16] 0.0, 128
        %1955 = vxpose.xlu0.b32.cont [11/16] 0.0, 128
        %1956 = vxpose.xlu0.b32.cont [12/16] 0.0, 128
        %1957 = vxpose.xlu0.b32.cont [13/16] 0.0, 128
        %1958 = vxpose.xlu0.b32.cont [14/16] 0.0, 128
        %1959 = vxpose.xlu0.b32.cont [15/16] 0.0, 128
        %1960 = vxpose.xlu0.b32.end [16/16] 0.0, 128
        %v1961 = vpop.trf.xlu0
        %v1962 = vpop.trf.xlu0
        %v1963 = vpop.trf.xlu0
        %v1964 = vpop.trf.xlu0
        %v1965 = vpop.trf.xlu0
        %v1966 = vpop.trf.xlu0
        %v1967 = vpop.trf.xlu0
        %v1968 = vpop.trf.xlu0
        %v1969 = vpop.trf.xlu0
        %v1970 = vpop.trf.xlu0
        %v1971 = vpop.trf.xlu0
        %v1972 = vpop.trf.xlu0
        %v1973 = vpop.trf.xlu0
        %v1974 = vpop.trf.xlu0
        %v1975 = vpop.trf.xlu0
        %v1976 = vpop.trf.xlu0
        %1977 = vxpose.xlu0.b32.start [1/16] %v1862, 128
        %1978 = vxpose.xlu0.b32.cont [2/16] 0.0, 128
        %1979 = vxpose.xlu0.b32.cont [3/16] 0.0, 128
        %1980 = vxpose.xlu0.b32.cont [4/16] 0.0, 128
        %1981 = vxpose.xlu0.b32.cont [5/16] 0.0, 128
        %1982 = vxpose.xlu0.b32.cont [6/16] 0.0, 128
        %1983 = vxpose.xlu0.b32.cont [7/16] 0.0, 128
        %1984 = vxpose.xlu0.b32.cont [8/16] 0.0, 128
        %1985 = vxpose.xlu0.b32.cont [9/16] 0.0, 128
        %1986 = vxpose.xlu0.b32.cont [10/16] 0.0, 128
        %1987 = vxpose.xlu0.b32.cont [11/16] 0.0, 128
        %1988 = vxpose.xlu0.b32.cont [12/16] 0.0, 128
        %1989 = vxpose.xlu0.b32.cont [13/16] 0.0, 128
        %1990 = vxpose.xlu0.b32.cont [14/16] 0.0, 128
        %1991 = vxpose.xlu0.b32.cont [15/16] 0.0, 128
        %1992 = vxpose.xlu0.b32.end [16/16] 0.0, 128
        %v1993 = vpop.trf.xlu0
        %v1994 = vpop.trf.xlu0
        %v1995 = vpop.trf.xlu0
        %v1996 = vpop.trf.xlu0
        %v1997 = vpop.trf.xlu0
        %v1998 = vpop.trf.xlu0
        %v1999 = vpop.trf.xlu0
        %v2000 = vpop.trf.xlu0
        %v2001 = vpop.trf.xlu0
        %v2002 = vpop.trf.xlu0
        %v2003 = vpop.trf.xlu0
        %v2004 = vpop.trf.xlu0
        %v2005 = vpop.trf.xlu0
        %v2006 = vpop.trf.xlu0
        %v2007 = vpop.trf.xlu0
        %v2008 = vpop.trf.xlu0
        %2009 = vxpose.xlu0.b32.start [1/16] %v1908, 128
        %2010 = vxpose.xlu0.b32.cont [2/16] 0.0, 128
        %2011 = vxpose.xlu0.b32.cont [3/16] 0.0, 128
        %2012 = vxpose.xlu0.b32.cont [4/16] 0.0, 128
        %2013 = vxpose.xlu0.b32.cont [5/16] 0.0, 128
        %2014 = vxpose.xlu0.b32.cont [6/16] 0.0, 128
        %2015 = vxpose.xlu0.b32.cont [7/16] 0.0, 128
        %2016 = vxpose.xlu0.b32.cont [8/16] 0.0, 128
        %2017 = vxpose.xlu0.b32.cont [9/16] 0.0, 128
        %2018 = vxpose.xlu0.b32.cont [10/16] 0.0, 128
        %2019 = vxpose.xlu0.b32.cont [11/16] 0.0, 128
        %2020 = vxpose.xlu0.b32.cont [12/16] 0.0, 128
        %2021 = vxpose.xlu0.b32.cont [13/16] 0.0, 128
        %2022 = vxpose.xlu0.b32.cont [14/16] 0.0, 128
        %2023 = vxpose.xlu0.b32.cont [15/16] 0.0, 128
        %2024 = vxpose.xlu0.b32.end [16/16] 0.0, 128
        %v2025 = vpop.trf.xlu0
        %v2026 = vpop.trf.xlu0
        %v2027 = vpop.trf.xlu0
        %v2028 = vpop.trf.xlu0
        %v2029 = vpop.trf.xlu0
        %v2030 = vpop.trf.xlu0
        %v2031 = vpop.trf.xlu0
        %v2032 = vpop.trf.xlu0
        %v2033 = vpop.trf.xlu0
        %v2034 = vpop.trf.xlu0
        %v2035 = vpop.trf.xlu0
        %v2036 = vpop.trf.xlu0
        %v2037 = vpop.trf.xlu0
        %v2038 = vpop.trf.xlu0
        %v2039 = vpop.trf.xlu0
        %v2040 = vpop.trf.xlu0
        %v2041 = vcombine.low %v1929, %v1993
        %v2042 = vcombine.high %v1929, %v1993
        %v2044 = vunpack.c.l.s4 1983009808
        %v2045 = vunpack.c.0.s8 %v2044
        %v2046 = vlaneseq
        %v2047 = vshrl.u32 %v2046, 7
        %v2048 = vsub.s32 %v2045, %v2047
        %v2049 = vrot.slane %v2041, %v2048
        %v2051 = vunpack.c.l.s4 1983009808
        %v2052 = vunpack.c.0.s8 %v2051
        %v2053 = vlaneseq
        %v2054 = vshrl.u32 %v2053, 7
        %v2055 = vsub.s32 %v2052, %v2054
        %v2056 = vrot.slane %v2042, %v2055
        %v2057 = vcombine.low %v1961, %v2025
        %v2058 = vcombine.high %v1961, %v2025
        %v2060 = vunpack.c.l.s4 1983009808
        %v2061 = vunpack.c.0.s8 %v2060
        %v2062 = vlaneseq
        %v2063 = vshrl.u32 %v2062, 7
        %v2064 = vsub.s32 %v2061, %v2063
        %v2065 = vrot.slane %v2057, %v2064
        %v2067 = vunpack.c.l.s4 1983009808
        %v2068 = vunpack.c.0.s8 %v2067
        %v2069 = vlaneseq
        %v2070 = vshrl.u32 %v2069, 7
        %v2071 = vsub.s32 %v2068, %v2070
        %v2072 = vrot.slane %v2058, %v2071
        %v2073 = vcombine.low %v2049, %v2065
        %v2074 = vcombine.high %v2049, %v2065
        %v2076 = vunpack.c.l.s4 1934713408
        %v2077 = vunpack.c.0.s8 %v2076
        %v2078 = vlaneseq
        %v2079 = vshrl.u32 %v2078, 7
        %v2080 = vsub.s32 %v2077, %v2079
        %v2081 = vrot.slane %v2073, %v2080
        %v2083 = vunpack.c.l.s4 1934713408
        %v2084 = vunpack.c.0.s8 %v2083
        %v2085 = vlaneseq
        %v2086 = vshrl.u32 %v2085, 7
        %v2087 = vsub.s32 %v2084, %v2086
        %v2088 = vrot.slane %v2074, %v2087
        %v2089 = vcombine.low %v2056, %v2072
        %v2090 = vcombine.high %v2056, %v2072
        %v2092 = vunpack.c.l.s4 1934713408
        %v2093 = vunpack.c.0.s8 %v2092
        %v2094 = vlaneseq
        %v2095 = vshrl.u32 %v2094, 7
        %v2096 = vsub.s32 %v2093, %v2095
        %v2097 = vrot.slane %v2089, %v2096
        %v2099 = vunpack.c.l.s4 1934713408
        %v2100 = vunpack.c.0.s8 %v2099
        %v2101 = vlaneseq
        %v2102 = vshrl.u32 %v2101, 7
        %v2103 = vsub.s32 %v2100, %v2102
        %v2104 = vrot.slane %v2090, %v2103
        %v2105 = vcombine.high %v2081, 0.0
        %v2106 = vcombine.high %v2088, 0.0
        %v2107 = vcombine.high %v2097, 0.0
        %v2108 = vcombine.high %v2104, 0.0
        %v2109 = vld [vmem:[#allocation3] sm:$0xff]
        %v2110 = vcombine.low %v2081, %v2088
        %v2112 = vunpack.c.l.s4 1983009808
        %v2113 = vunpack.c.0.s8 %v2112
        %v2114 = vlaneseq
        %v2115 = vshrl.u32 %v2114, 7
        %v2116 = vsub.s32 %v2113, %v2115
        %v2117 = vrot.slane %v2110, %v2116
        %v2118 = vcombine.low %v2105, %v2106
        %v2120 = vunpack.c.l.s4 1983009808
        %v2121 = vunpack.c.0.s8 %v2120
        %v2122 = vlaneseq
        %v2123 = vshrl.u32 %v2122, 7
        %v2124 = vsub.s32 %v2121, %v2123
        %v2125 = vrot.slane %v2118, %v2124
        %v2126 = vcombine.low %v2097, %v2104
        %v2128 = vunpack.c.l.s4 1983009808
        %v2129 = vunpack.c.0.s8 %v2128
        %v2130 = vlaneseq
        %v2131 = vshrl.u32 %v2130, 7
        %v2132 = vsub.s32 %v2129, %v2131
        %v2133 = vrot.slane %v2126, %v2132
        %v2134 = vcombine.low %v2107, %v2108
        %v2136 = vunpack.c.l.s4 1983009808
        %v2137 = vunpack.c.0.s8 %v2136
        %v2138 = vlaneseq
        %v2139 = vshrl.u32 %v2138, 7
        %v2140 = vsub.s32 %v2137, %v2139
        %v2141 = vrot.slane %v2134, %v2140
        %v2142 = vcombine.low %v2117, %v2125
        %v2143 = vcombine.high %v2117, %v2125
        %v2145 = vunpack.c.l.s4 1934713408
        %v2146 = vunpack.c.0.s8 %v2145
        %v2147 = vlaneseq
        %v2148 = vshrl.u32 %v2147, 7
        %v2149 = vsub.s32 %v2146, %v2148
        %v2150 = vrot.slane %v2142, %v2149
        %v2152 = vunpack.c.l.s4 1934713408
        %v2153 = vunpack.c.0.s8 %v2152
        %v2154 = vlaneseq
        %v2155 = vshrl.u32 %v2154, 7
        %v2156 = vsub.s32 %v2153, %v2155
        %v2157 = vrot.slane %v2143, %v2156
        %v2158 = vcombine.low %v2133, %v2141
        %v2159 = vcombine.high %v2133, %v2141
        %v2161 = vunpack.c.l.s4 1934713408
        %v2162 = vunpack.c.0.s8 %v2161
        %v2163 = vlaneseq
        %v2164 = vshrl.u32 %v2163, 7
        %v2165 = vsub.s32 %v2162, %v2164
        %v2166 = vrot.slane %v2158, %v2165
        %v2168 = vunpack.c.l.s4 1934713408
        %v2169 = vunpack.c.0.s8 %v2168
        %v2170 = vlaneseq
        %v2171 = vshrl.u32 %v2170, 7
        %v2172 = vsub.s32 %v2169, %v2171
        %v2173 = vrot.slane %v2159, %v2172
        %v2174 = vcombine.low %v2150, %v2166
        %v2175 = vcombine.high %v2150, %v2166
        %v2176 = vcombine.low %v2157, %v2173
        %v2177 = vcombine.high %v2157, %v2173
        %2179 = vrot.lane.b32.xlu0 %v2175, 8
        %v2180 = vpop.permute.xlu0 %2179
        %2183 = vrot.lane.b32.xlu0 %v2176, 16
        %v2184 = vpop.permute.xlu0 %2183
        %2187 = vrot.lane.b32.xlu0 %v2177, 24
        %v2188 = vpop.permute.xlu0 %2187
        %v2190 = vsel %vm1090, %v2174, %v2180
        %vm2191 = vcmask 130048
        %v2192 = vsel %vm2191, %v2190, %v2184
        %vm2193 = vcmask 195584
        %v2194 = vsel %vm2193, %v2192, %v2188
        %v2195 = vadd.f32 %v2109, %v2194
        %vm2196 = vcmask 261120
        %2197 = vst.msk [vmem:[#allocation3] sm:$0xff] %vm2196, %v2195
        // Predicated region
        $region69: #{tpu_custom_call.1} parent=47 // pred_check
          %p2198 = pneg %p411
        $region70: #{tpu_custom_call.1} parent=47 // pred_check_branch
          %2200 = sbr.rel (%p2198) target = $region72
        $region71: #{tpu_custom_call.1} parent=47 // pred_region
          %v2201 = vld [vmem:[#allocation3] sm:$0xff]
          %v2202 = vpack.c.bf16 %v2201, %v2201
          %v2203 = vld [vmem:[%s5] sm:$0xf]
          %v2204 = vld [vmem:[%s5 + $0x4] sm:$0xf]
          %v2205 = vld [vmem:[%s5 + $0x8] sm:$0xf]
          %v2206 = vld [vmem:[%s5 + $0xc] sm:$0xf]
          %v2207 = vld [vmem:[%s6] sm:$0x1]
          %v2209 = vlaneseq
          %v2210 = vshrl.u32 %v2209, 7
          %v2211 = vsub.s32 0, %v2210
          %v2212 = vrot.slane %v2207, %v2211
          %v2218 = vunpack.c.l.b16 %v2203
          %v2219 = vunpack.c.l.b16 %v2204
          %v2220 = vunpack.c.l.b16 %v2205
          %v2221 = vunpack.c.l.b16 %v2206
          %v2222 = vpack.c.b16 %v2219, %v2218
          %v2223 = vpack.c.b16 %v2221, %v2220
          %v2227 = vsel %vm2196, %v2202, 0
          %2229 = vmatprep.subr.bf16.mxu0 0
          %2230 = vmatpush1.bf16.msra.mxu0 %v2222
          %2231 = vmatprep.subr.bf16.mxu0 0
          %2232 = vmatpush1.bf16.msra.mxu0 %v2223
          %2233 = vmatprep.subr.bf16.mxu0 0
          %2234 = vmatpush1.bf16.msra.mxu0 0
          %2235 = vmatprep.subr.bf16.mxu0 0
          %2236 = vmatpush1.bf16.msra.mxu0 0
          %2237 = vmatprep.subr.bf16.mxu0 0
          %2238 = vmatpush1.bf16.msra.mxu0 0
          %2239 = vmatprep.subr.bf16.mxu0 0
          %2240 = vmatpush1.bf16.msra.mxu0 0
          %2241 = vmatprep.subr.bf16.mxu0 0
          %2242 = vmatpush1.bf16.msra.mxu0 0
          %2243 = vmatprep.subr.bf16.mxu0 0
          %2244 = vmatpush1.bf16.msra.mxu0 0
          %2245 = vmatprep.subr.bf16.mxu0 0
          %2246 = vmatpush1.bf16.msra.mxu0 0
          %2247 = vmatprep.subr.bf16.mxu0 0
          %2248 = vmatpush1.bf16.msra.mxu0 0
          %2249 = vmatprep.subr.bf16.mxu0 0
          %2250 = vmatpush1.bf16.msra.mxu0 0
          %2251 = vmatprep.subr.bf16.mxu0 0
          %2252 = vmatpush1.bf16.msra.mxu0 0
          %2253 = vmatprep.subr.bf16.mxu0 0
          %2254 = vmatpush1.bf16.msra.mxu0 0
          %2255 = vmatprep.subr.bf16.mxu0 0
          %2256 = vmatpush1.bf16.msra.mxu0 0
          %2257 = vmatprep.subr.bf16.mxu0 0
          %2258 = vmatpush1.bf16.msra.mxu0 0
          %2259 = vmatprep.subr.bf16.mxu0 0
          %2260 = vmatpush1.bf16.msra.mxu0 0
          %2261 = vmatprep.mubr.bf16.mxu0 0
          %2262 = vmatmul.mubr.bf16.gmra.mrb[0].mxu0 %v2227
          %v2263 = vpop.f32.mrb[0].mxu0
          %v2264 = vadd.f32 %v2212, %v2263
          %v2265 = vpop.f32.mrb[0].mxu0
          %v2266 = vpop.f32.mrb[0].mxu0
          %v2267 = vpop.f32.mrb[0].mxu0
          %2268 = vdwg.mxu0
          %2269 = vst.msk [vmem:[%s409] sm:$0xff] %vm2196, %v2264
        $region72: #{tpu_custom_call.1} parent=47 // pred_fallthru
          _
        %s2270 = sand.u32 %s225, 1
        %s2271 = scalar_lea.sflag [#allocation6], %s2270
        %s2272 = sand.u32 %s225, 1
        %s2273 = smul.addr %s2272, 8
        %s2274 = scalar_lea.vmem [#allocation12], %s2273
        // Predicated region
        $region73: #{tpu_custom_call.1} parent=47 // pred_check
          %p2275 = pneg %p235
        $region74: #{tpu_custom_call.1} parent=47 // pred_check_branch
          %2277 = sbr.rel (%p2275) target = $region76
        $region75: #{tpu_custom_call.1} parent=47 // pred_region
          %s2279 = ssub.s32 128, 128
          %2280 = vsyncadd %s2271, %s2279
          %s2281 = sadd.s32 %s34, %s33
          %s2282 = smul.addr %s2281, 128
          %s2283 = scalar_lea.hbm %s7, %s2282
          %s2285 = sshll.u32 %s2274, 4
          %s2286 = int_to_ptr.vmem [resolvable:$true] %s2285
          %2288 = dma.vmem_to_hbm [thread:$0]  %s2286, 128, %s2283, %s2271
        $region76: #{tpu_custom_call.1} parent=47 // pred_fallthru
          _
      $region48: #{tpu_custom_call.1} parent=5 // pred_fallthru
        _
      %p2289 = scmp.le.s32.totalorder 2, %s23
      // Predicated region
      $region77: #{tpu_custom_call.1} parent=5 // pred_check
        %p2290 = pneg %p2289
      $region78: #{tpu_custom_call.1} parent=5 // pred_check_branch
        %2292 = sbr.rel (%p2290) target = $region80
      $region79: #{tpu_custom_call.1} parent=5 // pred_region
        %s2293 = ssub.s32 %s23, 2
        // Predicated region
        $region81: #{tpu_custom_call.1} parent=79 // pred_check
          %p2294 = pneg %p241
        $region82: #{tpu_custom_call.1} parent=79 // pred_check_branch
          %2296 = sbr.rel (%p2294) target = $region84
        $region83: #{tpu_custom_call.1} parent=79 // pred_region
          %s2297 = sand.u32 %s226, 1
          %s2298 = scalar_lea.sflag [#allocation6], %s2297
          %s2299 = sand.u32 %s226, 1
          %s2300 = smul.addr %s2299, 8
          %s2301 = scalar_lea.vmem [#allocation12], %s2300
          %2302 = dma.done %s2298, 128
        $region84: #{tpu_custom_call.1} parent=79 // pred_fallthru
          _
      $region80: #{tpu_custom_call.1} parent=5 // pred_fallthru
        _
    $region6: #{tpu_custom_call.1} parent=1 // loop_footer
      %s27 = sadd.s32 1, %s23
    $region7: #{tpu_custom_call.1} parent=1 // loop_footer_branch
      %22 = sbr.rel target = $region3
    $region8: #{tpu_custom_call.1} parent=1 // loop_exit
      _
    %2303 = vsyncpa [#allocation5], 1
    %s2304 = scalar_lea.sflag [#allocation5], 1
    %2305 = vsyncpa %s2304, 1
    %2306 = vsyncpa [#allocation8], 1
    %s2307 = scalar_lea.sflag [#allocation8], 1
    %2308 = vsyncpa %s2307, 1
    %2309 = vsyncpa [#allocation11], 1
    %2310 = vsyncpa [#allocation6], 1
    %s2311 = scalar_lea.sflag [#allocation6], 1
    %2312 = vsyncpa %s2311, 1

</llo_original>
